<compile_context>
chip_gen: v6e
topology: v6e:2x2x1
jax: 0.10.0
libtpu: 0.0.40
codegen_flags: <defaults>
</compile_context>

<pallas_src>
import functools

import jax
import jax.numpy as jnp
from jax import lax
from jax.experimental import pallas as pl
from jax.experimental.pallas import tpu as pltpu


def _round_up(x, m):
    return ((x + m - 1) // m) * m


def pooled_kernel(tok_ref, table_ref, pooled_ref, *, seq_len, vocab_pad):
    """Fused embedding gather + mean over seq for one batch tile (one-hot MXU).

    tok_ref    : VMEM int32 [tb, seq_len]      token ids for this batch tile
    table_ref  : VMEM bf16  [vocab_pad, emb]   embedding table (VMEM-resident)
    pooled_ref : VMEM f32   [tb, emb]          mean embedding per row
    """
    tb = pooled_ref.shape[0]
    tok = tok_ref[...]                                            # (tb, L) int32
    iota_v = lax.broadcasted_iota(jnp.int32, (tb, vocab_pad), 1)  # hoisted out of loop

    # counts[b, v] = #{t : tok[b, t] == v}.  seq_len is a small static int, so
    # this loop fully unrolls into independent VPU compare+add passes — no
    # carried scalar-address / dynamic-slice dependency chain.
    counts = jnp.zeros((tb, vocab_pad), jnp.float32)
    for t in range(seq_len):
        counts = counts + (tok[:, t:t + 1] == iota_v).astype(jnp.float32)

    # counts <= seq_len (<= 256) are exactly representable in bf16, so casting
    # to the table dtype keeps the MXU on its native bf16 path (f32 accumulate).
    # TODO(synk): for seq_len > 256 keep counts in f32 here.
    pooled = jnp.dot(counts.astype(table_ref.dtype), table_ref[...],
                     preferred_element_type=jnp.float32)
    # Mean over the sequence (== avg_pool2d((L,1))), single full-tile store.
    # NOTE: emb=32 < 128 lanes means this store is masked; acceptable (tiny).
    pooled_ref[...] = pooled * (1.0 / seq_len)


def _choose_batch_tile(bs):
    """Batch tile: large enough to amortize per-step pipeline overhead, >=2 grid
    steps when possible (v7x has 2 TensorCores), capped at 128 for vreg budget."""
    bs8 = _round_up(bs, 8)
    if bs8 >= 256:
        return 128
    if bs8 >= 16:
        return _round_up(bs8 // 2, 8)
    return bs8


def _pooled_pallas(tokens_p, table_p, *, tb, seq_len, vocab_pad, emb, bs_pad,
                   vmem_limit, single_buffer_table):
    table_spec_kwargs = {}
    if single_buffer_table:
        # Constant block index across the grid -> fetched once; single buffer
        # halves the dominant VMEM resident (matters for real-size tables / v7x).
        table_spec_kwargs["pipeline_mode"] = pl.Buffered(1)

    kernel = functools.partial(pooled_kernel, seq_len=seq_len, vocab_pad=vocab_pad)
    return pl.pallas_call(
        kernel,
        out_shape=jax.ShapeDtypeStruct((bs_pad, emb), jnp.float32),
        grid=(bs_pad // tb,),
        in_specs=[
            pl.BlockSpec((tb, seq_len), lambda b: (b, 0)),                       # tokens tile
            pl.BlockSpec((vocab_pad, emb), lambda b: (0, 0), **table_spec_kwargs),  # resident table
        ],
        out_specs=pl.BlockSpec((tb, emb), lambda b: (b, 0)),
        compiler_params=pltpu.CompilerParams(
            dimension_semantics=("parallel",),   # batch tiles are independent
            vmem_limit_bytes=vmem_limit,
        ),
    )(tokens_p, table_p)


def model_forward(tokens, emb_table, fc2_weight, fc2_thr, fc2_bias, *,
                  tb=None, table_dtype=jnp.bfloat16):
    """Returns (out [bs, 2] f32, nnz scalar) matching Model.forward.

    table_dtype=jnp.float32 recovers exact PyTorch f32 embedding math; bf16
    (default) halves the table's HBM/VMEM footprint, with f32 accumulation.
    """
    bs, seq_len = tokens.shape
    vocab, emb = emb_table.shape

    if tb is None:
        tb = _choose_batch_tile(bs)
    bs_pad = _round_up(bs, tb)

    tokens_p = tokens.astype(jnp.int32)
    if bs_pad != bs:
        # Padded rows pool to table[0]; they are sliced off below.
        tokens_p = jnp.pad(tokens_p, ((0, bs_pad - bs), (0, 0)))

    # Pad the vocab to a multiple of 128 lanes (MXU contraction dim); padded
    # rows are zero and contribute nothing.
    vocab_pad = _round_up(vocab, 128)
    table_p = emb_table.astype(table_dtype)
    if vocab_pad != vocab:
        table_p = jnp.pad(table_p, ((0, vocab_pad - vocab), (0, 0)))

    # VMEM budget: resident table (single buffer) + double-buffered token /
    # pooled tiles + headroom; capped at 48 MiB so it also fits v7x (64 MiB
    # physical).  TODO(synk): on v5e/v6e (128 MiB VMEM) this cap can be raised
    # to ~96 MiB for multi-10-MiB tables; tables beyond that should stay in
    # HBM (memory_space=pl.ANY) with manual per-slice DMA instead of residency.
    itemsize = jnp.dtype(table_dtype).itemsize
    resident = (vocab_pad * emb * itemsize
                + 2 * tb * seq_len * 4 + 2 * tb * emb * 4)
    vmem_limit = int(min(max(resident + (8 << 20), 16 << 20), 48 << 20))

    try:
        pooled = _pooled_pallas(tokens_p, table_p, tb=tb, seq_len=seq_len,
                                vocab_pad=vocab_pad, emb=emb, bs_pad=bs_pad,
                                vmem_limit=vmem_limit, single_buffer_table=True)
    except Exception:
        # TODO(synk): some JAX versions reject pl.Buffered(1) on the top-level
        # grid pipeline; fall back to the default double-buffered table.
        pooled = _pooled_pallas(tokens_p, table_p, tb=tb, seq_len=seq_len,
                                vocab_pad=vocab_pad, emb=emb, bs_pad=bs_pad,
                                vmem_limit=vmem_limit, single_buffer_table=False)
    pooled = pooled[:bs]

    # ---- grid-invariant tail (tiny [E,2] gating + [bs,E]x[E,2] projection) ----
    # Hoisted out of the kernel: avoids re-running tanh/mask per grid step and a
    # lane-sparse (last dim = 2) matmul output in VMEM.
    w = fc2_weight.astype(jnp.float32)
    thr = jnp.tanh(fc2_thr.astype(jnp.float32) + w)
    gate = jnp.maximum(w * (1.0 + thr), 0.0)              # relu(fc2_weight * (1 + thr))
    real_w = w * (gate > 0.0).astype(jnp.float32)         # .to(bool).to(float)
    # mirrors: print(torch.sum(real_w.to(torch.bool).to(torch.float)))
    nnz = jnp.sum((real_w != 0.0).astype(jnp.float32))
    out = pooled @ real_w + fc2_bias.astype(jnp.float32)
    return out, nnz


if __name__ == "__main__":
    # Small shapes consistent with the module (forward implies emb_size == hid_size).
    max_words, emb_size, hid_size = 100, 32, 32
    bs, maxlen = 16, 32

    key = jax.random.PRNGKey(0)
    k_tok, k_emb, k_w2, k_t2 = jax.random.split(key, 4)

    tokens = jax.random.randint(k_tok, (bs, maxlen), 0, max_words, dtype=jnp.int32)
    emb_table = jax.random.normal(k_emb, (max_words, emb_size), dtype=jnp.float32)
    # Parameters: normal(0, 0.1) like the module; bias is normal(0, 0.0) == zeros.
    fc2_weight = 0.1 * jax.random.normal(k_w2, (hid_size, 2), dtype=jnp.float32)
    fc2_thr = 0.1 * jax.random.normal(k_t2, (hid_size, 2), dtype=jnp.float32)
    fc2_bias = jnp.zeros((2,), dtype=jnp.float32)

    out, nnz = model_forward(tokens, emb_table, fc2_weight, fc2_thr, fc2_bias)
    jax.block_until_ready(out)
    jax.block_until_ready(nnz)

    # Reference 1: consistent with the kernel's bf16 table (exactly what the MXU sees).
    table_q = emb_table.astype(jnp.bfloat16).astype(jnp.float32)
    x_q = jnp.take(table_q, tokens, axis=0).mean(axis=1)
    thr_r = jnp.tanh(fc2_thr + fc2_weight)
    rw = fc2_weight * (jnp.maximum(fc2_weight * (1.0 + thr_r), 0.0) > 0.0).astype(jnp.float32)
    ref_q = x_q @ rw + fc2_bias

    # Reference 2: pure f32 (PyTorch-exact); only the bf16 table quantization separates us.
    x_f32 = jnp.take(emb_table, tokens, axis=0).mean(axis=1)
    ref_f32 = x_f32 @ rw + fc2_bias

    assert out.shape == (bs, 2) and out.dtype == jnp.float32
    assert jnp.allclose(out, ref_q, atol=2e-4, rtol=2e-4)
    assert jnp.allclose(out, ref_f32, atol=5e-3, rtol=5e-3)
    assert int(nnz) == int(jnp.sum((rw != 0.0).astype(jnp.float32)))
    print("KERNEL_OK")
</pallas_src>

<mosaic_0001>
module attributes {stable_mosaic.version = 11 : i64} {
  func.func @pooled_kernel(%arg0: i32, %arg1: memref<8x32xi32, #tpu.memory_space<vmem>>, %arg2: memref<128x32xbf16, #tpu.memory_space<vmem>>, %arg3: memref<8x32xf32, #tpu.memory_space<vmem>>) attributes {dimension_semantics = [#tpu.dimension_semantics<parallel>], iteration_bounds = array<i64: 2>, scalar_prefetch = 0 : i64, scratch_operands = 0 : i64, tpu.core_type = #tpu.core_type<tc>, window_params = [{transform_indices = @transform_0, window_bounds = array<i64: 8, 32>}, {pipeline_mode = #tpu.pipeline_mode<synchronous>, transform_indices = @transform_1, window_bounds = array<i64: 128, 32>}, {transform_indices = @transform_2, window_bounds = array<i64: 8, 32>}]} {
    %c0 = arith.constant 0 : index
    %c0_0 = arith.constant 0 : index
    %0 = vector.load %arg1[%c0, %c0_0] : memref<8x32xi32, #tpu.memory_space<vmem>>, vector<8x32xi32>
    %1 = tpu.iota {dimensions = array<i32: 1>} : vector<8x128xi32>
    %cst = arith.constant 0.000000e+00 : f32
    %2 = vector.broadcast %cst : f32 to vector<8x128xf32>
    %3 = vector.extract_strided_slice %0 {offsets = [0, 0], sizes = [8, 1], strides = [1, 1]} : vector<8x32xi32> to vector<8x1xi32>
    %4 = vector.broadcast %3 : vector<8x1xi32> to vector<8x128xi32>
    %5 = arith.cmpi eq, %4, %1 : vector<8x128xi32>
    %6 = arith.extui %5 : vector<8x128xi1> to vector<8x128xi32>
    %7 = arith.sitofp %6 : vector<8x128xi32> to vector<8x128xf32>
    %8 = arith.addf %2, %7 : vector<8x128xf32>
    %9 = vector.extract_strided_slice %0 {offsets = [0, 1], sizes = [8, 1], strides = [1, 1]} : vector<8x32xi32> to vector<8x1xi32>
    %10 = vector.broadcast %9 : vector<8x1xi32> to vector<8x128xi32>
    %11 = arith.cmpi eq, %10, %1 : vector<8x128xi32>
    %12 = arith.extui %11 : vector<8x128xi1> to vector<8x128xi32>
    %13 = arith.sitofp %12 : vector<8x128xi32> to vector<8x128xf32>
    %14 = arith.addf %8, %13 : vector<8x128xf32>
    %15 = vector.extract_strided_slice %0 {offsets = [0, 2], sizes = [8, 1], strides = [1, 1]} : vector<8x32xi32> to vector<8x1xi32>
    %16 = vector.broadcast %15 : vector<8x1xi32> to vector<8x128xi32>
    %17 = arith.cmpi eq, %16, %1 : vector<8x128xi32>
    %18 = arith.extui %17 : vector<8x128xi1> to vector<8x128xi32>
    %19 = arith.sitofp %18 : vector<8x128xi32> to vector<8x128xf32>
    %20 = arith.addf %14, %19 : vector<8x128xf32>
    %21 = vector.extract_strided_slice %0 {offsets = [0, 3], sizes = [8, 1], strides = [1, 1]} : vector<8x32xi32> to vector<8x1xi32>
    %22 = vector.broadcast %21 : vector<8x1xi32> to vector<8x128xi32>
    %23 = arith.cmpi eq, %22, %1 : vector<8x128xi32>
    %24 = arith.extui %23 : vector<8x128xi1> to vector<8x128xi32>
    %25 = arith.sitofp %24 : vector<8x128xi32> to vector<8x128xf32>
    %26 = arith.addf %20, %25 : vector<8x128xf32>
    %27 = vector.extract_strided_slice %0 {offsets = [0, 4], sizes = [8, 1], strides = [1, 1]} : vector<8x32xi32> to vector<8x1xi32>
    %28 = vector.broadcast %27 : vector<8x1xi32> to vector<8x128xi32>
    %29 = arith.cmpi eq, %28, %1 : vector<8x128xi32>
    %30 = arith.extui %29 : vector<8x128xi1> to vector<8x128xi32>
    %31 = arith.sitofp %30 : vector<8x128xi32> to vector<8x128xf32>
    %32 = arith.addf %26, %31 : vector<8x128xf32>
    %33 = vector.extract_strided_slice %0 {offsets = [0, 5], sizes = [8, 1], strides = [1, 1]} : vector<8x32xi32> to vector<8x1xi32>
    %34 = vector.broadcast %33 : vector<8x1xi32> to vector<8x128xi32>
    %35 = arith.cmpi eq, %34, %1 : vector<8x128xi32>
    %36 = arith.extui %35 : vector<8x128xi1> to vector<8x128xi32>
    %37 = arith.sitofp %36 : vector<8x128xi32> to vector<8x128xf32>
    %38 = arith.addf %32, %37 : vector<8x128xf32>
    %39 = vector.extract_strided_slice %0 {offsets = [0, 6], sizes = [8, 1], strides = [1, 1]} : vector<8x32xi32> to vector<8x1xi32>
    %40 = vector.broadcast %39 : vector<8x1xi32> to vector<8x128xi32>
    %41 = arith.cmpi eq, %40, %1 : vector<8x128xi32>
    %42 = arith.extui %41 : vector<8x128xi1> to vector<8x128xi32>
    %43 = arith.sitofp %42 : vector<8x128xi32> to vector<8x128xf32>
    %44 = arith.addf %38, %43 : vector<8x128xf32>
    %45 = vector.extract_strided_slice %0 {offsets = [0, 7], sizes = [8, 1], strides = [1, 1]} : vector<8x32xi32> to vector<8x1xi32>
    %46 = vector.broadcast %45 : vector<8x1xi32> to vector<8x128xi32>
    %47 = arith.cmpi eq, %46, %1 : vector<8x128xi32>
    %48 = arith.extui %47 : vector<8x128xi1> to vector<8x128xi32>
    %49 = arith.sitofp %48 : vector<8x128xi32> to vector<8x128xf32>
    %50 = arith.addf %44, %49 : vector<8x128xf32>
    %51 = vector.extract_strided_slice %0 {offsets = [0, 8], sizes = [8, 1], strides = [1, 1]} : vector<8x32xi32> to vector<8x1xi32>
    %52 = vector.broadcast %51 : vector<8x1xi32> to vector<8x128xi32>
    %53 = arith.cmpi eq, %52, %1 : vector<8x128xi32>
    %54 = arith.extui %53 : vector<8x128xi1> to vector<8x128xi32>
    %55 = arith.sitofp %54 : vector<8x128xi32> to vector<8x128xf32>
    %56 = arith.addf %50, %55 : vector<8x128xf32>
    %57 = vector.extract_strided_slice %0 {offsets = [0, 9], sizes = [8, 1], strides = [1, 1]} : vector<8x32xi32> to vector<8x1xi32>
    %58 = vector.broadcast %57 : vector<8x1xi32> to vector<8x128xi32>
    %59 = arith.cmpi eq, %58, %1 : vector<8x128xi32>
    %60 = arith.extui %59 : vector<8x128xi1> to vector<8x128xi32>
    %61 = arith.sitofp %60 : vector<8x128xi32> to vector<8x128xf32>
    %62 = arith.addf %56, %61 : vector<8x128xf32>
    %63 = vector.extract_strided_slice %0 {offsets = [0, 10], sizes = [8, 1], strides = [1, 1]} : vector<8x32xi32> to vector<8x1xi32>
    %64 = vector.broadcast %63 : vector<8x1xi32> to vector<8x128xi32>
    %65 = arith.cmpi eq, %64, %1 : vector<8x128xi32>
    %66 = arith.extui %65 : vector<8x128xi1> to vector<8x128xi32>
    %67 = arith.sitofp %66 : vector<8x128xi32> to vector<8x128xf32>
    %68 = arith.addf %62, %67 : vector<8x128xf32>
    %69 = vector.extract_strided_slice %0 {offsets = [0, 11], sizes = [8, 1], strides = [1, 1]} : vector<8x32xi32> to vector<8x1xi32>
    %70 = vector.broadcast %69 : vector<8x1xi32> to vector<8x128xi32>
    %71 = arith.cmpi eq, %70, %1 : vector<8x128xi32>
    %72 = arith.extui %71 : vector<8x128xi1> to vector<8x128xi32>
    %73 = arith.sitofp %72 : vector<8x128xi32> to vector<8x128xf32>
    %74 = arith.addf %68, %73 : vector<8x128xf32>
    %75 = vector.extract_strided_slice %0 {offsets = [0, 12], sizes = [8, 1], strides = [1, 1]} : vector<8x32xi32> to vector<8x1xi32>
    %76 = vector.broadcast %75 : vector<8x1xi32> to vector<8x128xi32>
    %77 = arith.cmpi eq, %76, %1 : vector<8x128xi32>
    %78 = arith.extui %77 : vector<8x128xi1> to vector<8x128xi32>
    %79 = arith.sitofp %78 : vector<8x128xi32> to vector<8x128xf32>
    %80 = arith.addf %74, %79 : vector<8x128xf32>
    %81 = vector.extract_strided_slice %0 {offsets = [0, 13], sizes = [8, 1], strides = [1, 1]} : vector<8x32xi32> to vector<8x1xi32>
    %82 = vector.broadcast %81 : vector<8x1xi32> to vector<8x128xi32>
    %83 = arith.cmpi eq, %82, %1 : vector<8x128xi32>
    %84 = arith.extui %83 : vector<8x128xi1> to vector<8x128xi32>
    %85 = arith.sitofp %84 : vector<8x128xi32> to vector<8x128xf32>
    %86 = arith.addf %80, %85 : vector<8x128xf32>
    %87 = vector.extract_strided_slice %0 {offsets = [0, 14], sizes = [8, 1], strides = [1, 1]} : vector<8x32xi32> to vector<8x1xi32>
    %88 = vector.broadcast %87 : vector<8x1xi32> to vector<8x128xi32>
    %89 = arith.cmpi eq, %88, %1 : vector<8x128xi32>
    %90 = arith.extui %89 : vector<8x128xi1> to vector<8x128xi32>
    %91 = arith.sitofp %90 : vector<8x128xi32> to vector<8x128xf32>
    %92 = arith.addf %86, %91 : vector<8x128xf32>
    %93 = vector.extract_strided_slice %0 {offsets = [0, 15], sizes = [8, 1], strides = [1, 1]} : vector<8x32xi32> to vector<8x1xi32>
    %94 = vector.broadcast %93 : vector<8x1xi32> to vector<8x128xi32>
    %95 = arith.cmpi eq, %94, %1 : vector<8x128xi32>
    %96 = arith.extui %95 : vector<8x128xi1> to vector<8x128xi32>
    %97 = arith.sitofp %96 : vector<8x128xi32> to vector<8x128xf32>
    %98 = arith.addf %92, %97 : vector<8x128xf32>
    %99 = vector.extract_strided_slice %0 {offsets = [0, 16], sizes = [8, 1], strides = [1, 1]} : vector<8x32xi32> to vector<8x1xi32>
    %100 = vector.broadcast %99 : vector<8x1xi32> to vector<8x128xi32>
    %101 = arith.cmpi eq, %100, %1 : vector<8x128xi32>
    %102 = arith.extui %101 : vector<8x128xi1> to vector<8x128xi32>
    %103 = arith.sitofp %102 : vector<8x128xi32> to vector<8x128xf32>
    %104 = arith.addf %98, %103 : vector<8x128xf32>
    %105 = vector.extract_strided_slice %0 {offsets = [0, 17], sizes = [8, 1], strides = [1, 1]} : vector<8x32xi32> to vector<8x1xi32>
    %106 = vector.broadcast %105 : vector<8x1xi32> to vector<8x128xi32>
    %107 = arith.cmpi eq, %106, %1 : vector<8x128xi32>
    %108 = arith.extui %107 : vector<8x128xi1> to vector<8x128xi32>
    %109 = arith.sitofp %108 : vector<8x128xi32> to vector<8x128xf32>
    %110 = arith.addf %104, %109 : vector<8x128xf32>
    %111 = vector.extract_strided_slice %0 {offsets = [0, 18], sizes = [8, 1], strides = [1, 1]} : vector<8x32xi32> to vector<8x1xi32>
    %112 = vector.broadcast %111 : vector<8x1xi32> to vector<8x128xi32>
    %113 = arith.cmpi eq, %112, %1 : vector<8x128xi32>
    %114 = arith.extui %113 : vector<8x128xi1> to vector<8x128xi32>
    %115 = arith.sitofp %114 : vector<8x128xi32> to vector<8x128xf32>
    %116 = arith.addf %110, %115 : vector<8x128xf32>
    %117 = vector.extract_strided_slice %0 {offsets = [0, 19], sizes = [8, 1], strides = [1, 1]} : vector<8x32xi32> to vector<8x1xi32>
    %118 = vector.broadcast %117 : vector<8x1xi32> to vector<8x128xi32>
    %119 = arith.cmpi eq, %118, %1 : vector<8x128xi32>
    %120 = arith.extui %119 : vector<8x128xi1> to vector<8x128xi32>
    %121 = arith.sitofp %120 : vector<8x128xi32> to vector<8x128xf32>
    %122 = arith.addf %116, %121 : vector<8x128xf32>
    %123 = vector.extract_strided_slice %0 {offsets = [0, 20], sizes = [8, 1], strides = [1, 1]} : vector<8x32xi32> to vector<8x1xi32>
    %124 = vector.broadcast %123 : vector<8x1xi32> to vector<8x128xi32>
    %125 = arith.cmpi eq, %124, %1 : vector<8x128xi32>
    %126 = arith.extui %125 : vector<8x128xi1> to vector<8x128xi32>
    %127 = arith.sitofp %126 : vector<8x128xi32> to vector<8x128xf32>
    %128 = arith.addf %122, %127 : vector<8x128xf32>
    %129 = vector.extract_strided_slice %0 {offsets = [0, 21], sizes = [8, 1], strides = [1, 1]} : vector<8x32xi32> to vector<8x1xi32>
    %130 = vector.broadcast %129 : vector<8x1xi32> to vector<8x128xi32>
    %131 = arith.cmpi eq, %130, %1 : vector<8x128xi32>
    %132 = arith.extui %131 : vector<8x128xi1> to vector<8x128xi32>
    %133 = arith.sitofp %132 : vector<8x128xi32> to vector<8x128xf32>
    %134 = arith.addf %128, %133 : vector<8x128xf32>
    %135 = vector.extract_strided_slice %0 {offsets = [0, 22], sizes = [8, 1], strides = [1, 1]} : vector<8x32xi32> to vector<8x1xi32>
    %136 = vector.broadcast %135 : vector<8x1xi32> to vector<8x128xi32>
    %137 = arith.cmpi eq, %136, %1 : vector<8x128xi32>
    %138 = arith.extui %137 : vector<8x128xi1> to vector<8x128xi32>
    %139 = arith.sitofp %138 : vector<8x128xi32> to vector<8x128xf32>
    %140 = arith.addf %134, %139 : vector<8x128xf32>
    %141 = vector.extract_strided_slice %0 {offsets = [0, 23], sizes = [8, 1], strides = [1, 1]} : vector<8x32xi32> to vector<8x1xi32>
    %142 = vector.broadcast %141 : vector<8x1xi32> to vector<8x128xi32>
    %143 = arith.cmpi eq, %142, %1 : vector<8x128xi32>
    %144 = arith.extui %143 : vector<8x128xi1> to vector<8x128xi32>
    %145 = arith.sitofp %144 : vector<8x128xi32> to vector<8x128xf32>
    %146 = arith.addf %140, %145 : vector<8x128xf32>
    %147 = vector.extract_strided_slice %0 {offsets = [0, 24], sizes = [8, 1], strides = [1, 1]} : vector<8x32xi32> to vector<8x1xi32>
    %148 = vector.broadcast %147 : vector<8x1xi32> to vector<8x128xi32>
    %149 = arith.cmpi eq, %148, %1 : vector<8x128xi32>
    %150 = arith.extui %149 : vector<8x128xi1> to vector<8x128xi32>
    %151 = arith.sitofp %150 : vector<8x128xi32> to vector<8x128xf32>
    %152 = arith.addf %146, %151 : vector<8x128xf32>
    %153 = vector.extract_strided_slice %0 {offsets = [0, 25], sizes = [8, 1], strides = [1, 1]} : vector<8x32xi32> to vector<8x1xi32>
    %154 = vector.broadcast %153 : vector<8x1xi32> to vector<8x128xi32>
    %155 = arith.cmpi eq, %154, %1 : vector<8x128xi32>
    %156 = arith.extui %155 : vector<8x128xi1> to vector<8x128xi32>
    %157 = arith.sitofp %156 : vector<8x128xi32> to vector<8x128xf32>
    %158 = arith.addf %152, %157 : vector<8x128xf32>
    %159 = vector.extract_strided_slice %0 {offsets = [0, 26], sizes = [8, 1], strides = [1, 1]} : vector<8x32xi32> to vector<8x1xi32>
    %160 = vector.broadcast %159 : vector<8x1xi32> to vector<8x128xi32>
    %161 = arith.cmpi eq, %160, %1 : vector<8x128xi32>
    %162 = arith.extui %161 : vector<8x128xi1> to vector<8x128xi32>
    %163 = arith.sitofp %162 : vector<8x128xi32> to vector<8x128xf32>
    %164 = arith.addf %158, %163 : vector<8x128xf32>
    %165 = vector.extract_strided_slice %0 {offsets = [0, 27], sizes = [8, 1], strides = [1, 1]} : vector<8x32xi32> to vector<8x1xi32>
    %166 = vector.broadcast %165 : vector<8x1xi32> to vector<8x128xi32>
    %167 = arith.cmpi eq, %166, %1 : vector<8x128xi32>
    %168 = arith.extui %167 : vector<8x128xi1> to vector<8x128xi32>
    %169 = arith.sitofp %168 : vector<8x128xi32> to vector<8x128xf32>
    %170 = arith.addf %164, %169 : vector<8x128xf32>
    %171 = vector.extract_strided_slice %0 {offsets = [0, 28], sizes = [8, 1], strides = [1, 1]} : vector<8x32xi32> to vector<8x1xi32>
    %172 = vector.broadcast %171 : vector<8x1xi32> to vector<8x128xi32>
    %173 = arith.cmpi eq, %172, %1 : vector<8x128xi32>
    %174 = arith.extui %173 : vector<8x128xi1> to vector<8x128xi32>
    %175 = arith.sitofp %174 : vector<8x128xi32> to vector<8x128xf32>
    %176 = arith.addf %170, %175 : vector<8x128xf32>
    %177 = vector.extract_strided_slice %0 {offsets = [0, 29], sizes = [8, 1], strides = [1, 1]} : vector<8x32xi32> to vector<8x1xi32>
    %178 = vector.broadcast %177 : vector<8x1xi32> to vector<8x128xi32>
    %179 = arith.cmpi eq, %178, %1 : vector<8x128xi32>
    %180 = arith.extui %179 : vector<8x128xi1> to vector<8x128xi32>
    %181 = arith.sitofp %180 : vector<8x128xi32> to vector<8x128xf32>
    %182 = arith.addf %176, %181 : vector<8x128xf32>
    %183 = vector.extract_strided_slice %0 {offsets = [0, 30], sizes = [8, 1], strides = [1, 1]} : vector<8x32xi32> to vector<8x1xi32>
    %184 = vector.broadcast %183 : vector<8x1xi32> to vector<8x128xi32>
    %185 = arith.cmpi eq, %184, %1 : vector<8x128xi32>
    %186 = arith.extui %185 : vector<8x128xi1> to vector<8x128xi32>
    %187 = arith.sitofp %186 : vector<8x128xi32> to vector<8x128xf32>
    %188 = arith.addf %182, %187 : vector<8x128xf32>
    %189 = vector.extract_strided_slice %0 {offsets = [0, 31], sizes = [8, 1], strides = [1, 1]} : vector<8x32xi32> to vector<8x1xi32>
    %190 = vector.broadcast %189 : vector<8x1xi32> to vector<8x128xi32>
    %191 = arith.cmpi eq, %190, %1 : vector<8x128xi32>
    %192 = arith.extui %191 : vector<8x128xi1> to vector<8x128xi32>
    %193 = arith.sitofp %192 : vector<8x128xi32> to vector<8x128xf32>
    %194 = arith.addf %188, %193 : vector<8x128xf32>
    %195 = arith.truncf %194 : vector<8x128xf32> to vector<8x128xbf16>
    %c0_1 = arith.constant 0 : index
    %c0_2 = arith.constant 0 : index
    %196 = vector.load %arg2[%c0_1, %c0_2] : memref<128x32xbf16, #tpu.memory_space<vmem>>, vector<128x32xbf16>
    %cst_3 = arith.constant dense<0.000000e+00> : vector<8x32xf32>
    %197 = tpu.matmul %195, %196, %cst_3 {dimension_numbers = #tpu.dot_dimension_numbers<[1], [0], [0], [1], [0, 0, 1, 1], [], []>} : vector<8x128xbf16>, vector<128x32xbf16>, vector<8x32xf32> -> vector<8x32xf32>
    %cst_4 = arith.constant 3.125000e-02 : f32
    %198 = vector.broadcast %cst_4 : f32 to vector<8x32xf32>
    %199 = arith.mulf %197, %198 : vector<8x32xf32>
    %c0_5 = arith.constant 0 : index
    %c0_6 = arith.constant 0 : index
    %200 = vector.load %arg3[%c0_5, %c0_6] : memref<8x32xf32, #tpu.memory_space<vmem>>, vector<8x32xf32>
    tpu.vector_store %arg3[%c0_5, %c0_6], %199 {strides = array<i32>} : memref<8x32xf32, #tpu.memory_space<vmem>>, vector<8x32xf32>,
    return
  }
  func.func @transform_0(%arg0: i32) -> (i32, i32) {
    %c0_i32 = arith.constant 0 : i32
    %c0_i32_0 = arith.constant 0 : i32
    return %arg0, %c0_i32 : i32, i32
  }
  func.func @transform_1(%arg0: i32) -> (i32, i32) {
    %c0_i32 = arith.constant 0 : i32
    %c0_i32_0 = arith.constant 0 : i32
    %c0_i32_1 = arith.constant 0 : i32
    return %c0_i32, %c0_i32_0 : i32, i32
  }
  func.func @transform_2(%arg0: i32) -> (i32, i32) {
    %c0_i32 = arith.constant 0 : i32
    %c0_i32_0 = arith.constant 0 : i32
    return %arg0, %c0_i32 : i32, i32
  }
}

module attributes {stable_mosaic.version = 11 : i64} {
  func.func @pooled_kernel(%arg0: i32, %arg1: memref<8x32xi32, #tpu.memory_space<vmem>>, %arg2: memref<128x32xbf16, #tpu.memory_space<vmem>>, %arg3: memref<8x32xf32, #tpu.memory_space<vmem>>) attributes {dimension_semantics = [#tpu.dimension_semantics<parallel>], iteration_bounds = array<i64: 2>, scalar_prefetch = 0 : i64, scratch_operands = 0 : i64, tpu.core_type = #tpu.core_type<tc>, window_params = [{transform_indices = @transform_0, window_bounds = array<i64: 8, 32>}, {pipeline_mode = #tpu.pipeline_mode<synchronous>, transform_indices = @transform_1, window_bounds = array<i64: 128, 32>}, {transform_indices = @transform_2, window_bounds = array<i64: 8, 32>}]} {
    %c0 = arith.constant 0 : index
    %c0_0 = arith.constant 0 : index
    %0 = vector.load %arg1[%c0, %c0_0] : memref<8x32xi32, #tpu.memory_space<vmem>>, vector<8x32xi32>
    %1 = tpu.iota {dimensions = array<i32: 1>} : vector<8x128xi32>
    %cst = arith.constant 0.000000e+00 : f32
    %2 = vector.broadcast %cst : f32 to vector<8x128xf32>
    %3 = vector.extract_strided_slice %0 {offsets = [0, 0], sizes = [8, 1], strides = [1, 1]} : vector<8x32xi32> to vector<8x1xi32>
    %4 = vector.broadcast %3 : vector<8x1xi32> to vector<8x128xi32>
    %5 = arith.cmpi eq, %4, %1 : vector<8x128xi32>
    %6 = arith.extui %5 : vector<8x128xi1> to vector<8x128xi32>
    %7 = arith.sitofp %6 : vector<8x128xi32> to vector<8x128xf32>
    %8 = arith.addf %2, %7 : vector<8x128xf32>
    %9 = vector.extract_strided_slice %0 {offsets = [0, 1], sizes = [8, 1], strides = [1, 1]} : vector<8x32xi32> to vector<8x1xi32>
    %10 = vector.broadcast %9 : vector<8x1xi32> to vector<8x128xi32>
    %11 = arith.cmpi eq, %10, %1 : vector<8x128xi32>
    %12 = arith.extui %11 : vector<8x128xi1> to vector<8x128xi32>
    %13 = arith.sitofp %12 : vector<8x128xi32> to vector<8x128xf32>
    %14 = arith.addf %8, %13 : vector<8x128xf32>
    %15 = vector.extract_strided_slice %0 {offsets = [0, 2], sizes = [8, 1], strides = [1, 1]} : vector<8x32xi32> to vector<8x1xi32>
    %16 = vector.broadcast %15 : vector<8x1xi32> to vector<8x128xi32>
    %17 = arith.cmpi eq, %16, %1 : vector<8x128xi32>
    %18 = arith.extui %17 : vector<8x128xi1> to vector<8x128xi32>
    %19 = arith.sitofp %18 : vector<8x128xi32> to vector<8x128xf32>
    %20 = arith.addf %14, %19 : vector<8x128xf32>
    %21 = vector.extract_strided_slice %0 {offsets = [0, 3], sizes = [8, 1], strides = [1, 1]} : vector<8x32xi32> to vector<8x1xi32>
    %22 = vector.broadcast %21 : vector<8x1xi32> to vector<8x128xi32>
    %23 = arith.cmpi eq, %22, %1 : vector<8x128xi32>
    %24 = arith.extui %23 : vector<8x128xi1> to vector<8x128xi32>
    %25 = arith.sitofp %24 : vector<8x128xi32> to vector<8x128xf32>
    %26 = arith.addf %20, %25 : vector<8x128xf32>
    %27 = vector.extract_strided_slice %0 {offsets = [0, 4], sizes = [8, 1], strides = [1, 1]} : vector<8x32xi32> to vector<8x1xi32>
    %28 = vector.broadcast %27 : vector<8x1xi32> to vector<8x128xi32>
    %29 = arith.cmpi eq, %28, %1 : vector<8x128xi32>
    %30 = arith.extui %29 : vector<8x128xi1> to vector<8x128xi32>
    %31 = arith.sitofp %30 : vector<8x128xi32> to vector<8x128xf32>
    %32 = arith.addf %26, %31 : vector<8x128xf32>
    %33 = vector.extract_strided_slice %0 {offsets = [0, 5], sizes = [8, 1], strides = [1, 1]} : vector<8x32xi32> to vector<8x1xi32>
    %34 = vector.broadcast %33 : vector<8x1xi32> to vector<8x128xi32>
    %35 = arith.cmpi eq, %34, %1 : vector<8x128xi32>
    %36 = arith.extui %35 : vector<8x128xi1> to vector<8x128xi32>
    %37 = arith.sitofp %36 : vector<8x128xi32> to vector<8x128xf32>
    %38 = arith.addf %32, %37 : vector<8x128xf32>
    %39 = vector.extract_strided_slice %0 {offsets = [0, 6], sizes = [8, 1], strides = [1, 1]} : vector<8x32xi32> to vector<8x1xi32>
    %40 = vector.broadcast %39 : vector<8x1xi32> to vector<8x128xi32>
    %41 = arith.cmpi eq, %40, %1 : vector<8x128xi32>
    %42 = arith.extui %41 : vector<8x128xi1> to vector<8x128xi32>
    %43 = arith.sitofp %42 : vector<8x128xi32> to vector<8x128xf32>
    %44 = arith.addf %38, %43 : vector<8x128xf32>
    %45 = vector.extract_strided_slice %0 {offsets = [0, 7], sizes = [8, 1], strides = [1, 1]} : vector<8x32xi32> to vector<8x1xi32>
    %46 = vector.broadcast %45 : vector<8x1xi32> to vector<8x128xi32>
    %47 = arith.cmpi eq, %46, %1 : vector<8x128xi32>
    %48 = arith.extui %47 : vector<8x128xi1> to vector<8x128xi32>
    %49 = arith.sitofp %48 : vector<8x128xi32> to vector<8x128xf32>
    %50 = arith.addf %44, %49 : vector<8x128xf32>
    %51 = vector.extract_strided_slice %0 {offsets = [0, 8], sizes = [8, 1], strides = [1, 1]} : vector<8x32xi32> to vector<8x1xi32>
    %52 = vector.broadcast %51 : vector<8x1xi32> to vector<8x128xi32>
    %53 = arith.cmpi eq, %52, %1 : vector<8x128xi32>
    %54 = arith.extui %53 : vector<8x128xi1> to vector<8x128xi32>
    %55 = arith.sitofp %54 : vector<8x128xi32> to vector<8x128xf32>
    %56 = arith.addf %50, %55 : vector<8x128xf32>
    %57 = vector.extract_strided_slice %0 {offsets = [0, 9], sizes = [8, 1], strides = [1, 1]} : vector<8x32xi32> to vector<8x1xi32>
    %58 = vector.broadcast %57 : vector<8x1xi32> to vector<8x128xi32>
    %59 = arith.cmpi eq, %58, %1 : vector<8x128xi32>
    %60 = arith.extui %59 : vector<8x128xi1> to vector<8x128xi32>
    %61 = arith.sitofp %60 : vector<8x128xi32> to vector<8x128xf32>
    %62 = arith.addf %56, %61 : vector<8x128xf32>
    %63 = vector.extract_strided_slice %0 {offsets = [0, 10], sizes = [8, 1], strides = [1, 1]} : vector<8x32xi32> to vector<8x1xi32>
    %64 = vector.broadcast %63 : vector<8x1xi32> to vector<8x128xi32>
    %65 = arith.cmpi eq, %64, %1 : vector<8x128xi32>
    %66 = arith.extui %65 : vector<8x128xi1> to vector<8x128xi32>
    %67 = arith.sitofp %66 : vector<8x128xi32> to vector<8x128xf32>
    %68 = arith.addf %62, %67 : vector<8x128xf32>
    %69 = vector.extract_strided_slice %0 {offsets = [0, 11], sizes = [8, 1], strides = [1, 1]} : vector<8x32xi32> to vector<8x1xi32>
    %70 = vector.broadcast %69 : vector<8x1xi32> to vector<8x128xi32>
    %71 = arith.cmpi eq, %70, %1 : vector<8x128xi32>
    %72 = arith.extui %71 : vector<8x128xi1> to vector<8x128xi32>
    %73 = arith.sitofp %72 : vector<8x128xi32> to vector<8x128xf32>
    %74 = arith.addf %68, %73 : vector<8x128xf32>
    %75 = vector.extract_strided_slice %0 {offsets = [0, 12], sizes = [8, 1], strides = [1, 1]} : vector<8x32xi32> to vector<8x1xi32>
    %76 = vector.broadcast %75 : vector<8x1xi32> to vector<8x128xi32>
    %77 = arith.cmpi eq, %76, %1 : vector<8x128xi32>
    %78 = arith.extui %77 : vector<8x128xi1> to vector<8x128xi32>
    %79 = arith.sitofp %78 : vector<8x128xi32> to vector<8x128xf32>
    %80 = arith.addf %74, %79 : vector<8x128xf32>
    %81 = vector.extract_strided_slice %0 {offsets = [0, 13], sizes = [8, 1], strides = [1, 1]} : vector<8x32xi32> to vector<8x1xi32>
    %82 = vector.broadcast %81 : vector<8x1xi32> to vector<8x128xi32>
    %83 = arith.cmpi eq, %82, %1 : vector<8x128xi32>
    %84 = arith.extui %83 : vector<8x128xi1> to vector<8x128xi32>
    %85 = arith.sitofp %84 : vector<8x128xi32> to vector<8x128xf32>
    %86 = arith.addf %80, %85 : vector<8x128xf32>
    %87 = vector.extract_strided_slice %0 {offsets = [0, 14], sizes = [8, 1], strides = [1, 1]} : vector<8x32xi32> to vector<8x1xi32>
    %88 = vector.broadcast %87 : vector<8x1xi32> to vector<8x128xi32>
    %89 = arith.cmpi eq, %88, %1 : vector<8x128xi32>
    %90 = arith.extui %89 : vector<8x128xi1> to vector<8x128xi32>
    %91 = arith.sitofp %90 : vector<8x128xi32> to vector<8x128xf32>
    %92 = arith.addf %86, %91 : vector<8x128xf32>
    %93 = vector.extract_strided_slice %0 {offsets = [0, 15], sizes = [8, 1], strides = [1, 1]} : vector<8x32xi32> to vector<8x1xi32>
    %94 = vector.broadcast %93 : vector<8x1xi32> to vector<8x128xi32>
    %95 = arith.cmpi eq, %94, %1 : vector<8x128xi32>
    %96 = arith.extui %95 : vector<8x128xi1> to vector<8x128xi32>
    %97 = arith.sitofp %96 : vector<8x128xi32> to vector<8x128xf32>
    %98 = arith.addf %92, %97 : vector<8x128xf32>
    %99 = vector.extract_strided_slice %0 {offsets = [0, 16], sizes = [8, 1], strides = [1, 1]} : vector<8x32xi32> to vector<8x1xi32>
    %100 = vector.broadcast %99 : vector<8x1xi32> to vector<8x128xi32>
    %101 = arith.cmpi eq, %100, %1 : vector<8x128xi32>
    %102 = arith.extui %101 : vector<8x128xi1> to vector<8x128xi32>
    %103 = arith.sitofp %102 : vector<8x128xi32> to vector<8x128xf32>
    %104 = arith.addf %98, %103 : vector<8x128xf32>
    %105 = vector.extract_strided_slice %0 {offsets = [0, 17], sizes = [8, 1], strides = [1, 1]} : vector<8x32xi32> to vector<8x1xi32>
    %106 = vector.broadcast %105 : vector<8x1xi32> to vector<8x128xi32>
    %107 = arith.cmpi eq, %106, %1 : vector<8x128xi32>
    %108 = arith.extui %107 : vector<8x128xi1> to vector<8x128xi32>
    %109 = arith.sitofp %108 : vector<8x128xi32> to vector<8x128xf32>
    %110 = arith.addf %104, %109 : vector<8x128xf32>
    %111 = vector.extract_strided_slice %0 {offsets = [0, 18], sizes = [8, 1], strides = [1, 1]} : vector<8x32xi32> to vector<8x1xi32>
    %112 = vector.broadcast %111 : vector<8x1xi32> to vector<8x128xi32>
    %113 = arith.cmpi eq, %112, %1 : vector<8x128xi32>
    %114 = arith.extui %113 : vector<8x128xi1> to vector<8x128xi32>
    %115 = arith.sitofp %114 : vector<8x128xi32> to vector<8x128xf32>
    %116 = arith.addf %110, %115 : vector<8x128xf32>
    %117 = vector.extract_strided_slice %0 {offsets = [0, 19], sizes = [8, 1], strides = [1, 1]} : vector<8x32xi32> to vector<8x1xi32>
    %118 = vector.broadcast %117 : vector<8x1xi32> to vector<8x128xi32>
    %119 = arith.cmpi eq, %118, %1 : vector<8x128xi32>
    %120 = arith.extui %119 : vector<8x128xi1> to vector<8x128xi32>
    %121 = arith.sitofp %120 : vector<8x128xi32> to vector<8x128xf32>
    %122 = arith.addf %116, %121 : vector<8x128xf32>
    %123 = vector.extract_strided_slice %0 {offsets = [0, 20], sizes = [8, 1], strides = [1, 1]} : vector<8x32xi32> to vector<8x1xi32>
    %124 = vector.broadcast %123 : vector<8x1xi32> to vector<8x128xi32>
    %125 = arith.cmpi eq, %124, %1 : vector<8x128xi32>
    %126 = arith.extui %125 : vector<8x128xi1> to vector<8x128xi32>
    %127 = arith.sitofp %126 : vector<8x128xi32> to vector<8x128xf32>
    %128 = arith.addf %122, %127 : vector<8x128xf32>
    %129 = vector.extract_strided_slice %0 {offsets = [0, 21], sizes = [8, 1], strides = [1, 1]} : vector<8x32xi32> to vector<8x1xi32>
    %130 = vector.broadcast %129 : vector<8x1xi32> to vector<8x128xi32>
    %131 = arith.cmpi eq, %130, %1 : vector<8x128xi32>
    %132 = arith.extui %131 : vector<8x128xi1> to vector<8x128xi32>
    %133 = arith.sitofp %132 : vector<8x128xi32> to vector<8x128xf32>
    %134 = arith.addf %128, %133 : vector<8x128xf32>
    %135 = vector.extract_strided_slice %0 {offsets = [0, 22], sizes = [8, 1], strides = [1, 1]} : vector<8x32xi32> to vector<8x1xi32>
    %136 = vector.broadcast %135 : vector<8x1xi32> to vector<8x128xi32>
    %137 = arith.cmpi eq, %136, %1 : vector<8x128xi32>
    %138 = arith.extui %137 : vector<8x128xi1> to vector<8x128xi32>
    %139 = arith.sitofp %138 : vector<8x128xi32> to vector<8x128xf32>
    %140 = arith.addf %134, %139 : vector<8x128xf32>
    %141 = vector.extract_strided_slice %0 {offsets = [0, 23], sizes = [8, 1], strides = [1, 1]} : vector<8x32xi32> to vector<8x1xi32>
    %142 = vector.broadcast %141 : vector<8x1xi32> to vector<8x128xi32>
    %143 = arith.cmpi eq, %142, %1 : vector<8x128xi32>
    %144 = arith.extui %143 : vector<8x128xi1> to vector<8x128xi32>
    %145 = arith.sitofp %144 : vector<8x128xi32> to vector<8x128xf32>
    %146 = arith.addf %140, %145 : vector<8x128xf32>
    %147 = vector.extract_strided_slice %0 {offsets = [0, 24], sizes = [8, 1], strides = [1, 1]} : vector<8x32xi32> to vector<8x1xi32>
    %148 = vector.broadcast %147 : vector<8x1xi32> to vector<8x128xi32>
    %149 = arith.cmpi eq, %148, %1 : vector<8x128xi32>
    %150 = arith.extui %149 : vector<8x128xi1> to vector<8x128xi32>
    %151 = arith.sitofp %150 : vector<8x128xi32> to vector<8x128xf32>
    %152 = arith.addf %146, %151 : vector<8x128xf32>
    %153 = vector.extract_strided_slice %0 {offsets = [0, 25], sizes = [8, 1], strides = [1, 1]} : vector<8x32xi32> to vector<8x1xi32>
    %154 = vector.broadcast %153 : vector<8x1xi32> to vector<8x128xi32>
    %155 = arith.cmpi eq, %154, %1 : vector<8x128xi32>
    %156 = arith.extui %155 : vector<8x128xi1> to vector<8x128xi32>
    %157 = arith.sitofp %156 : vector<8x128xi32> to vector<8x128xf32>
    %158 = arith.addf %152, %157 : vector<8x128xf32>
    %159 = vector.extract_strided_slice %0 {offsets = [0, 26], sizes = [8, 1], strides = [1, 1]} : vector<8x32xi32> to vector<8x1xi32>
    %160 = vector.broadcast %159 : vector<8x1xi32> to vector<8x128xi32>
    %161 = arith.cmpi eq, %160, %1 : vector<8x128xi32>
    %162 = arith.extui %161 : vector<8x128xi1> to vector<8x128xi32>
    %163 = arith.sitofp %162 : vector<8x128xi32> to vector<8x128xf32>
    %164 = arith.addf %158, %163 : vector<8x128xf32>
    %165 = vector.extract_strided_slice %0 {offsets = [0, 27], sizes = [8, 1], strides = [1, 1]} : vector<8x32xi32> to vector<8x1xi32>
    %166 = vector.broadcast %165 : vector<8x1xi32> to vector<8x128xi32>
    %167 = arith.cmpi eq, %166, %1 : vector<8x128xi32>
    %168 = arith.extui %167 : vector<8x128xi1> to vector<8x128xi32>
    %169 = arith.sitofp %168 : vector<8x128xi32> to vector<8x128xf32>
    %170 = arith.addf %164, %169 : vector<8x128xf32>
    %171 = vector.extract_strided_slice %0 {offsets = [0, 28], sizes = [8, 1], strides = [1, 1]} : vector<8x32xi32> to vector<8x1xi32>
    %172 = vector.broadcast %171 : vector<8x1xi32> to vector<8x128xi32>
    %173 = arith.cmpi eq, %172, %1 : vector<8x128xi32>
    %174 = arith.extui %173 : vector<8x128xi1> to vector<8x128xi32>
    %175 = arith.sitofp %174 : vector<8x128xi32> to vector<8x128xf32>
    %176 = arith.addf %170, %175 : vector<8x128xf32>
    %177 = vector.extract_strided_slice %0 {offsets = [0, 29], sizes = [8, 1], strides = [1, 1]} : vector<8x32xi32> to vector<8x1xi32>
    %178 = vector.broadcast %177 : vector<8x1xi32> to vector<8x128xi32>
    %179 = arith.cmpi eq, %178, %1 : vector<8x128xi32>
    %180 = arith.extui %179 : vector<8x128xi1> to vector<8x128xi32>
    %181 = arith.sitofp %180 : vector<8x128xi32> to vector<8x128xf32>
    %182 = arith.addf %176, %181 : vector<8x128xf32>
    %183 = vector.extract_strided_slice %0 {offsets = [0, 30], sizes = [8, 1], strides = [1, 1]} : vector<8x32xi32> to vector<8x1xi32>
    %184 = vector.broadcast %183 : vector<8x1xi32> to vector<8x128xi32>
    %185 = arith.cmpi eq, %184, %1 : vector<8x128xi32>
    %186 = arith.extui %185 : vector<8x128xi1> to vector<8x128xi32>
    %187 = arith.sitofp %186 : vector<8x128xi32> to vector<8x128xf32>
    %188 = arith.addf %182, %187 : vector<8x128xf32>
    %189 = vector.extract_strided_slice %0 {offsets = [0, 31], sizes = [8, 1], strides = [1, 1]} : vector<8x32xi32> to vector<8x1xi32>
    %190 = vector.broadcast %189 : vector<8x1xi32> to vector<8x128xi32>
    %191 = arith.cmpi eq, %190, %1 : vector<8x128xi32>
    %192 = arith.extui %191 : vector<8x128xi1> to vector<8x128xi32>
    %193 = arith.sitofp %192 : vector<8x128xi32> to vector<8x128xf32>
    %194 = arith.addf %188, %193 : vector<8x128xf32>
    %195 = arith.truncf %194 : vector<8x128xf32> to vector<8x128xbf16>
    %c0_1 = arith.constant 0 : index
    %c0_2 = arith.constant 0 : index
    %196 = vector.load %arg2[%c0_1, %c0_2] : memref<128x32xbf16, #tpu.memory_space<vmem>>, vector<128x32xbf16>
    %cst_3 = arith.constant dense<0.000000e+00> : vector<8x32xf32>
    %197 = tpu.matmul %195, %196, %cst_3 {dimension_numbers = #tpu.dot_dimension_numbers<[1], [0], [0], [1], [0, 0, 1, 1], [], []>} : vector<8x128xbf16>, vector<128x32xbf16>, vector<8x32xf32> -> vector<8x32xf32>
    %cst_4 = arith.constant 3.125000e-02 : f32
    %198 = vector.broadcast %cst_4 : f32 to vector<8x32xf32>
    %199 = arith.mulf %197, %198 : vector<8x32xf32>
    %c0_5 = arith.constant 0 : index
    %c0_6 = arith.constant 0 : index
    %200 = vector.load %arg3[%c0_5, %c0_6] : memref<8x32xf32, #tpu.memory_space<vmem>>, vector<8x32xf32>
    tpu.vector_store %arg3[%c0_5, %c0_6], %199 {strides = array<i32>} : memref<8x32xf32, #tpu.memory_space<vmem>>, vector<8x32xf32>,
    return
  }
  func.func @transform_0(%arg0: i32) -> (i32, i32) {
    %c0_i32 = arith.constant 0 : i32
    %c0_i32_0 = arith.constant 0 : i32
    return %arg0, %c0_i32 : i32, i32
  }
  func.func @transform_1(%arg0: i32) -> (i32, i32) {
    %c0_i32 = arith.constant 0 : i32
    %c0_i32_0 = arith.constant 0 : i32
    %c0_i32_1 = arith.constant 0 : i32
    return %c0_i32, %c0_i32_0 : i32, i32
  }
  func.func @transform_2(%arg0: i32) -> (i32, i32) {
    %c0_i32 = arith.constant 0 : i32
    %c0_i32_0 = arith.constant 0 : i32
    return %arg0, %c0_i32 : i32, i32
  }
}

</mosaic_0001>

<llo_original>
// kernel: tpu_custom_call.1
$region0: #{tpu_custom_call.1}
  #allocation0 [shape = 'u32[]', space=smem, size = 0x4, offset = 0x4, fixed_abs, tag = 'smem constant byte address 0x4 - core index']
  #allocation1 [shape = 'u32[144,128]{1,0:T(1,128)}', space=vmem, size = 0x12000, scoped, tag = 'internal scratch']
  %s0 = inlined_call_operand.vmem [shape: s32[16,32], index: 0, kind: input, shape index: {}]
  %s1 = inlined_call_operand.vmem [shape: bf16[128,32], index: 1, kind: input, shape index: {}]
  %s2 = inlined_call_operand.hbm [shape: f32[16,32], index: 2, kind: output, shape index: {}]
  %s3 = sld [smem:[#allocation0]]
  $region41: #{tpu_custom_call.1} parent=0
    _
  %s5 = ssub.s32 1, %s3
  %s6 = scalar_select 0, %s5, %s3
  $region1: #{tpu_custom_call.1} parent=0
    #allocation2 [shape = 'u8[8192]{0}', space=vmem, size = 0x2000, scoped, tag = 'output window, operand 0']
    #allocation3 [shape = 's32[2]{0}', space=sflag, size = 0x8, scoped, tag = 'scoped memory for tpu_custom_call.1']
    %7 = vsyncpa [#allocation3], 0
    %s8 = scalar_lea.sflag [#allocation3], 1
    %9 = vsyncpa %s8, 0
    loop: start=0, step=1, limit=4
    $region2: #{tpu_custom_call.1} parent=1 // loop_pre_header
      _
    $region3: #{tpu_custom_call.1} parent=1 // loop_header
      %s11 = sphi 0, %s15
      %p12 = scmp.ge.s32.totalorder %s11, 4
      %s21 = sphi 0, %s23
      %s24 = sphi 0, %s21
      %s25 = sphi 0, %s24
      %s41 = sphi 0, %s25
      %s45 = sphi 0, %s45
      %s47 = sphi 0, %s45
      %s48 = sphi 0, %s47
      %s62 = sphi 0, %s48
      %s68 = sphi 0, %s70
      %s71 = sphi 0, %s68
      %s72 = sphi 0, %s71
      %s88 = sphi 0, %s72
    $region4: #{tpu_custom_call.1} parent=1 // loop_header_branch
      %14 = sbr.rel (%p12) target = $region8
    $region5: #{tpu_custom_call.1} parent=1 // loop_body
      %s16 = ssub.s32 %s11, 1
      %s17 = ssub.s32 %s11, 2
      %s18 = sadd.s32 %s11, 1
      %s19 = ssub.s32 %s11, %s18
      %p20 = scmp.eq.s32.totalorder %s19, 0
      %s22 = sadd.s32 %s21, 1
      %s23 = scalar_select %p20, %s21, %s22
      %p26 = pneg %p20
      %p27 = scmp.eq.s32.totalorder %s11, 1
      %p28 = por %p26, %p27
      %p29 = scmp.ne.s32.totalorder %s21, %s24
      %p30 = scmp.eq.s32.totalorder %s11, 0
      %p31 = por %p29, %p30
      %p32 = scmp.ne.s32.totalorder %s21, %s24
      %p33 = scmp.eq.s32.totalorder %s16, 1
      %p34 = por %p32, %p33
      %p35 = scmp.ne.s32.totalorder %s24, %s25
      %p36 = scmp.eq.s32.totalorder %s16, 0
      %p37 = por %p35, %p36
      %p38 = scmp.ne.s32.totalorder %s24, %s25
      %p39 = scmp.eq.s32.totalorder %s17, 1
      %p40 = por %p38, %p39
      %p42 = scmp.ne.s32.totalorder %s25, %s41
      %p43 = scmp.eq.s32.totalorder %s17, 0
      %p44 = por %p42, %p43
      %s46 = sadd.s32 %s45, 1
      %p49 = scmp.eq.s32.totalorder %s11, 1
      %p50 = scmp.ne.s32.totalorder %s45, %s47
      %p51 = scmp.eq.s32.totalorder %s11, 0
      %p52 = por %p50, %p51
      %p53 = scmp.ne.s32.totalorder %s45, %s47
      %p54 = scmp.eq.s32.totalorder %s16, 1
      %p55 = por %p53, %p54
      %p56 = scmp.ne.s32.totalorder %s47, %s48
      %p57 = scmp.eq.s32.totalorder %s16, 0
      %p58 = por %p56, %p57
      %p59 = scmp.ne.s32.totalorder %s47, %s48
      %p60 = scmp.eq.s32.totalorder %s17, 1
      %p61 = por %p59, %p60
      %p63 = scmp.ne.s32.totalorder %s48, %s62
      %p64 = scmp.eq.s32.totalorder %s17, 0
      %p65 = por %p63, %p64
      %s66 = ssub.s32 %s11, %s18
      %p67 = scmp.eq.s32.totalorder %s66, 0
      %s69 = sadd.s32 %s68, 1
      %s70 = scalar_select %p67, %s68, %s69
      %p73 = pneg %p67
      %p74 = scmp.eq.s32.totalorder %s11, 1
      %p75 = por %p73, %p74
      %p76 = scmp.ne.s32.totalorder %s68, %s71
      %p77 = scmp.eq.s32.totalorder %s11, 0
      %p78 = por %p76, %p77
      %p79 = scmp.ne.s32.totalorder %s68, %s71
      %p80 = scmp.eq.s32.totalorder %s16, 1
      %p81 = por %p79, %p80
      %p82 = scmp.ne.s32.totalorder %s71, %s72
      %p83 = scmp.eq.s32.totalorder %s16, 0
      %p84 = por %p82, %p83
      %p85 = scmp.ne.s32.totalorder %s71, %s72
      %p86 = scmp.eq.s32.totalorder %s17, 1
      %p87 = por %p85, %p86
      %p89 = scmp.ne.s32.totalorder %s72, %s88
      %p90 = scmp.eq.s32.totalorder %s17, 0
      %p91 = por %p89, %p90
      %p92 = scmp.le.s32.totalorder 1, %s11
      %p93 = scmp.lt.s32.totalorder %s11, 3
      %p94 = pnand %p92, %p93
      %p95 = pneg %p94
      // Predicated region
      $region9: #{tpu_custom_call.1} parent=5 // pred_check
        _
      $region10: #{tpu_custom_call.1} parent=5 // pred_check_branch
        %97 = sbr.rel (%p94) target = $region12
      $region11: #{tpu_custom_call.1} parent=5 // pred_region
        %s98 = ssub.s32 %s11, 1
        // Predicated region
        $region13: #{tpu_custom_call.1} parent=11 // pred_check
          %p99 = pneg %p58
        $region14: #{tpu_custom_call.1} parent=11 // pred_check_branch
          %101 = sbr.rel (%p99) target = $region16
        $region15: #{tpu_custom_call.1} parent=11 // pred_region
          _
        $region16: #{tpu_custom_call.1} parent=11 // pred_fallthru
          _
      $region12: #{tpu_custom_call.1} parent=5 // pred_fallthru
        _
      %p102 = scmp.lt.s32.totalorder %s11, 2
      // Predicated region
      $region17: #{tpu_custom_call.1} parent=5 // pred_check
        %p103 = pneg %p102
      $region18: #{tpu_custom_call.1} parent=5 // pred_check_branch
        %105 = sbr.rel (%p103) target = $region20
      $region19: #{tpu_custom_call.1} parent=5 // pred_region
        // Predicated region
        $region21: #{tpu_custom_call.1} parent=19 // pred_check
          %p106 = pneg %p31
        $region22: #{tpu_custom_call.1} parent=19 // pred_check_branch
          %108 = sbr.rel (%p106) target = $region24
        $region23: #{tpu_custom_call.1} parent=19 // pred_region
          %p109 = scmp.lt.s32.totalorder %s11, 1
          %s110 = scalar_select %p109, %s11, 1
          %s111 = smul.addr %s110, 8
          %s112 = scalar_lea.vmem %s0, %s111
        $region24: #{tpu_custom_call.1} parent=19 // pred_fallthru
          _
      $region20: #{tpu_custom_call.1} parent=5 // pred_fallthru
        _
      %p113 = scmp.le.s32.totalorder 1, %s11
      %p114 = scmp.lt.s32.totalorder %s11, 3
      %p115 = pnand %p113, %p114
      %p116 = pneg %p115
      // Predicated region
      $region25: #{tpu_custom_call.1} parent=5 // pred_check
        _
      $region26: #{tpu_custom_call.1} parent=5 // pred_check_branch
        %118 = sbr.rel (%p115) target = $region28
      $region27: #{tpu_custom_call.1} parent=5 // pred_region
        %s119 = ssub.s32 %s11, 1
        %p120 = scmp.lt.s32.totalorder %s16, 1
        %s121 = scalar_select %p120, %s16, 1
        %s122 = smul.addr %s121, 8
        %s123 = scalar_lea.vmem %s0, %s122
        %p124 = pneg %p37
        %p125 = pneg %p34
        %p126 = pneg %p58
        %p127 = pneg %p55
        %p128 = pneg %p84
        %p129 = pneg %p81
        %s130 = sand.u32 %s71, 1
        %s131 = scalar_lea.sflag [#allocation3], %s130
        %s132 = sand.u32 %s71, 1
        %s133 = smul.addr %s132, 8
        %s134 = scalar_lea.vmem [#allocation2], %s133
        %p135 = scmp.lt.s32.totalorder %s16, 1
        %s136 = scalar_select %p135, %s16, 1
        %s137 = smul.addr %s136, 8
        %s138 = scalar_lea.vmem %s0, %s137
        %v140 = vld [vmem:[%s138] sm:$0xff]
        %v141 = vlaneseq
        %v142 = vand.u32 %v141, 127
        %143 = vset.pattern.permute.xlu0 0
        %144 = vperm.xlu0 %143, %v140
        %v145 = vpop.permute.xlu0 %144
        %vm146 = vcmp.eq.s32.totalorder %v145, %v142
        %v147 = vsel %vm146, 1, 0
        %v148 = vcvt.s32.f32 %v147
        %v149 = vadd.f32 %v148, 0.0
        %150 = vset.pattern.permute.xlu0 1
        %151 = vperm.xlu0 %150, %v140
        %v152 = vpop.permute.xlu0 %151
        %vm153 = vcmp.eq.s32.totalorder %v152, %v142
        %v154 = vsel %vm153, 1, 0
        %v155 = vcvt.s32.f32 %v154
        %v156 = vadd.f32 %v149, %v155
        %157 = vset.pattern.permute.xlu0 2
        %158 = vperm.xlu0 %157, %v140
        %v159 = vpop.permute.xlu0 %158
        %vm160 = vcmp.eq.s32.totalorder %v159, %v142
        %v161 = vsel %vm160, 1, 0
        %v162 = vcvt.s32.f32 %v161
        %v163 = vadd.f32 %v156, %v162
        %164 = vset.pattern.permute.xlu0 3
        %165 = vperm.xlu0 %164, %v140
        %v166 = vpop.permute.xlu0 %165
        %vm167 = vcmp.eq.s32.totalorder %v166, %v142
        %v168 = vsel %vm167, 1, 0
        %v169 = vcvt.s32.f32 %v168
        %v170 = vadd.f32 %v163, %v169
        %171 = vset.pattern.permute.xlu0 4
        %172 = vperm.xlu0 %171, %v140
        %v173 = vpop.permute.xlu0 %172
        %vm174 = vcmp.eq.s32.totalorder %v173, %v142
        %v175 = vsel %vm174, 1, 0
        %v176 = vcvt.s32.f32 %v175
        %v177 = vadd.f32 %v170, %v176
        %178 = vset.pattern.permute.xlu0 5
        %179 = vperm.xlu0 %178, %v140
        %v180 = vpop.permute.xlu0 %179
        %vm181 = vcmp.eq.s32.totalorder %v180, %v142
        %v182 = vsel %vm181, 1, 0
        %v183 = vcvt.s32.f32 %v182
        %v184 = vadd.f32 %v177, %v183
        %185 = vset.pattern.permute.xlu0 6
        %186 = vperm.xlu0 %185, %v140
        %v187 = vpop.permute.xlu0 %186
        %vm188 = vcmp.eq.s32.totalorder %v187, %v142
        %v189 = vsel %vm188, 1, 0
        %v190 = vcvt.s32.f32 %v189
        %v191 = vadd.f32 %v184, %v190
        %192 = vset.pattern.permute.xlu0 7
        %193 = vperm.xlu0 %192, %v140
        %v194 = vpop.permute.xlu0 %193
        %vm195 = vcmp.eq.s32.totalorder %v194, %v142
        %v196 = vsel %vm195, 1, 0
        %v197 = vcvt.s32.f32 %v196
        %v198 = vadd.f32 %v191, %v197
        %199 = vset.pattern.permute.xlu0 8
        %200 = vperm.xlu0 %199, %v140
        %v201 = vpop.permute.xlu0 %200
        %vm202 = vcmp.eq.s32.totalorder %v201, %v142
        %v203 = vsel %vm202, 1, 0
        %v204 = vcvt.s32.f32 %v203
        %v205 = vadd.f32 %v198, %v204
        %206 = vset.pattern.permute.xlu0 9
        %207 = vperm.xlu0 %206, %v140
        %v208 = vpop.permute.xlu0 %207
        %vm209 = vcmp.eq.s32.totalorder %v208, %v142
        %v210 = vsel %vm209, 1, 0
        %v211 = vcvt.s32.f32 %v210
        %v212 = vadd.f32 %v205, %v211
        %213 = vset.pattern.permute.xlu0 10
        %214 = vperm.xlu0 %213, %v140
        %v215 = vpop.permute.xlu0 %214
        %vm216 = vcmp.eq.s32.totalorder %v215, %v142
        %v217 = vsel %vm216, 1, 0
        %v218 = vcvt.s32.f32 %v217
        %v219 = vadd.f32 %v212, %v218
        %220 = vset.pattern.permute.xlu0 11
        %221 = vperm.xlu0 %220, %v140
        %v222 = vpop.permute.xlu0 %221
        %vm223 = vcmp.eq.s32.totalorder %v222, %v142
        %v224 = vsel %vm223, 1, 0
        %v225 = vcvt.s32.f32 %v224
        %v226 = vadd.f32 %v219, %v225
        %227 = vset.pattern.permute.xlu0 12
        %228 = vperm.xlu0 %227, %v140
        %v229 = vpop.permute.xlu0 %228
        %vm230 = vcmp.eq.s32.totalorder %v229, %v142
        %v231 = vsel %vm230, 1, 0
        %v232 = vcvt.s32.f32 %v231
        %v233 = vadd.f32 %v226, %v232
        %234 = vset.pattern.permute.xlu0 13
        %235 = vperm.xlu0 %234, %v140
        %v236 = vpop.permute.xlu0 %235
        %vm237 = vcmp.eq.s32.totalorder %v236, %v142
        %v238 = vsel %vm237, 1, 0
        %v239 = vcvt.s32.f32 %v238
        %v240 = vadd.f32 %v233, %v239
        %241 = vset.pattern.permute.xlu0 14
        %242 = vperm.xlu0 %241, %v140
        %v243 = vpop.permute.xlu0 %242
        %vm244 = vcmp.eq.s32.totalorder %v243, %v142
        %v245 = vsel %vm244, 1, 0
        %v246 = vcvt.s32.f32 %v245
        %v247 = vadd.f32 %v240, %v246
        %248 = vset.pattern.permute.xlu0 15
        %249 = vperm.xlu0 %248, %v140
        %v250 = vpop.permute.xlu0 %249
        %vm251 = vcmp.eq.s32.totalorder %v250, %v142
        %v252 = vsel %vm251, 1, 0
        %v253 = vcvt.s32.f32 %v252
        %v254 = vadd.f32 %v247, %v253
        %255 = vset.pattern.permute.xlu0 16
        %256 = vperm.xlu0 %255, %v140
        %v257 = vpop.permute.xlu0 %256
        %vm258 = vcmp.eq.s32.totalorder %v257, %v142
        %v259 = vsel %vm258, 1, 0
        %v260 = vcvt.s32.f32 %v259
        %v261 = vadd.f32 %v254, %v260
        %262 = vset.pattern.permute.xlu0 17
        %263 = vperm.xlu0 %262, %v140
        %v264 = vpop.permute.xlu0 %263
        %vm265 = vcmp.eq.s32.totalorder %v264, %v142
        %v266 = vsel %vm265, 1, 0
        %v267 = vcvt.s32.f32 %v266
        %v268 = vadd.f32 %v261, %v267
        %269 = vset.pattern.permute.xlu0 18
        %270 = vperm.xlu0 %269, %v140
        %v271 = vpop.permute.xlu0 %270
        %vm272 = vcmp.eq.s32.totalorder %v271, %v142
        %v273 = vsel %vm272, 1, 0
        %v274 = vcvt.s32.f32 %v273
        %v275 = vadd.f32 %v268, %v274
        %276 = vset.pattern.permute.xlu0 19
        %277 = vperm.xlu0 %276, %v140
        %v278 = vpop.permute.xlu0 %277
        %vm279 = vcmp.eq.s32.totalorder %v278, %v142
        %v280 = vsel %vm279, 1, 0
        %v281 = vcvt.s32.f32 %v280
        %v282 = vadd.f32 %v275, %v281
        %283 = vset.pattern.permute.xlu0 20
        %284 = vperm.xlu0 %283, %v140
        %v285 = vpop.permute.xlu0 %284
        %vm286 = vcmp.eq.s32.totalorder %v285, %v142
        %v287 = vsel %vm286, 1, 0
        %v288 = vcvt.s32.f32 %v287
        %v289 = vadd.f32 %v282, %v288
        %290 = vset.pattern.permute.xlu0 21
        %291 = vperm.xlu0 %290, %v140
        %v292 = vpop.permute.xlu0 %291
        %vm293 = vcmp.eq.s32.totalorder %v292, %v142
        %v294 = vsel %vm293, 1, 0
        %v295 = vcvt.s32.f32 %v294
        %v296 = vadd.f32 %v289, %v295
        %297 = vset.pattern.permute.xlu0 22
        %298 = vperm.xlu0 %297, %v140
        %v299 = vpop.permute.xlu0 %298
        %vm300 = vcmp.eq.s32.totalorder %v299, %v142
        %v301 = vsel %vm300, 1, 0
        %v302 = vcvt.s32.f32 %v301
        %v303 = vadd.f32 %v296, %v302
        %304 = vset.pattern.permute.xlu0 23
        %305 = vperm.xlu0 %304, %v140
        %v306 = vpop.permute.xlu0 %305
        %vm307 = vcmp.eq.s32.totalorder %v306, %v142
        %v308 = vsel %vm307, 1, 0
        %v309 = vcvt.s32.f32 %v308
        %v310 = vadd.f32 %v303, %v309
        %311 = vset.pattern.permute.xlu0 24
        %312 = vperm.xlu0 %311, %v140
        %v313 = vpop.permute.xlu0 %312
        %vm314 = vcmp.eq.s32.totalorder %v313, %v142
        %v315 = vsel %vm314, 1, 0
        %v316 = vcvt.s32.f32 %v315
        %v317 = vadd.f32 %v310, %v316
        %318 = vset.pattern.permute.xlu0 25
        %319 = vperm.xlu0 %318, %v140
        %v320 = vpop.permute.xlu0 %319
        %vm321 = vcmp.eq.s32.totalorder %v320, %v142
        %v322 = vsel %vm321, 1, 0
        %v323 = vcvt.s32.f32 %v322
        %v324 = vadd.f32 %v317, %v323
        %325 = vset.pattern.permute.xlu0 26
        %326 = vperm.xlu0 %325, %v140
        %v327 = vpop.permute.xlu0 %326
        %vm328 = vcmp.eq.s32.totalorder %v327, %v142
        %v329 = vsel %vm328, 1, 0
        %v330 = vcvt.s32.f32 %v329
        %v331 = vadd.f32 %v324, %v330
        %332 = vset.pattern.permute.xlu0 27
        %333 = vperm.xlu0 %332, %v140
        %v334 = vpop.permute.xlu0 %333
        %vm335 = vcmp.eq.s32.totalorder %v334, %v142
        %v336 = vsel %vm335, 1, 0
        %v337 = vcvt.s32.f32 %v336
        %v338 = vadd.f32 %v331, %v337
        %339 = vset.pattern.permute.xlu0 28
        %340 = vperm.xlu0 %339, %v140
        %v341 = vpop.permute.xlu0 %340
        %vm342 = vcmp.eq.s32.totalorder %v341, %v142
        %v343 = vsel %vm342, 1, 0
        %v344 = vcvt.s32.f32 %v343
        %v345 = vadd.f32 %v338, %v344
        %346 = vset.pattern.permute.xlu0 29
        %347 = vperm.xlu0 %346, %v140
        %v348 = vpop.permute.xlu0 %347
        %vm349 = vcmp.eq.s32.totalorder %v348, %v142
        %v350 = vsel %vm349, 1, 0
        %v351 = vcvt.s32.f32 %v350
        %v352 = vadd.f32 %v345, %v351
        %353 = vset.pattern.permute.xlu0 30
        %354 = vperm.xlu0 %353, %v140
        %v355 = vpop.permute.xlu0 %354
        %vm356 = vcmp.eq.s32.totalorder %v355, %v142
        %v357 = vsel %vm356, 1, 0
        %v358 = vcvt.s32.f32 %v357
        %v359 = vadd.f32 %v352, %v358
        %360 = vset.pattern.permute.xlu0 31
        %361 = vperm.xlu0 %360, %v140
        %v362 = vpop.permute.xlu0 %361
        %vm363 = vcmp.eq.s32.totalorder %v362, %v142
        %v364 = vsel %vm363, 1, 0
        %v365 = vcvt.s32.f32 %v364
        %v366 = vadd.f32 %v359, %v365
        %v367 = vpack.c.bf16 %v366, %v366
        %v368 = vld [vmem:[%s1] sm:$0xf]
        %v369 = vld [vmem:[%s1 + $0x4] sm:$0xf]
        %v370 = vld [vmem:[%s1 + $0x8] sm:$0xf]
        %v371 = vld [vmem:[%s1 + $0xc] sm:$0xf]
        %v372 = vld [vmem:[%s1 + $0x10] sm:$0xf]
        %v373 = vld [vmem:[%s1 + $0x14] sm:$0xf]
        %v374 = vld [vmem:[%s1 + $0x18] sm:$0xf]
        %v375 = vld [vmem:[%s1 + $0x1c] sm:$0xf]
        %v376 = vld [vmem:[%s1 + $0x20] sm:$0xf]
        %v377 = vld [vmem:[%s1 + $0x24] sm:$0xf]
        %v378 = vld [vmem:[%s1 + $0x28] sm:$0xf]
        %v379 = vld [vmem:[%s1 + $0x2c] sm:$0xf]
        %v380 = vld [vmem:[%s1 + $0x30] sm:$0xf]
        %v381 = vld [vmem:[%s1 + $0x34] sm:$0xf]
        %v382 = vld [vmem:[%s1 + $0x38] sm:$0xf]
        %v383 = vld [vmem:[%s1 + $0x3c] sm:$0xf]
        %v400 = vunpack.c.l.b16 %v368
        %v401 = vunpack.c.l.b16 %v369
        %v402 = vunpack.c.l.b16 %v370
        %v403 = vunpack.c.l.b16 %v371
        %v404 = vunpack.c.l.b16 %v372
        %v405 = vunpack.c.l.b16 %v373
        %v406 = vunpack.c.l.b16 %v374
        %v407 = vunpack.c.l.b16 %v375
        %v408 = vunpack.c.l.b16 %v376
        %v409 = vunpack.c.l.b16 %v377
        %v410 = vunpack.c.l.b16 %v378
        %v411 = vunpack.c.l.b16 %v379
        %v412 = vunpack.c.l.b16 %v380
        %v413 = vunpack.c.l.b16 %v381
        %v414 = vunpack.c.l.b16 %v382
        %v415 = vunpack.c.l.b16 %v383
        %v416 = vpack.c.b16 %v401, %v400
        %v417 = vpack.c.b16 %v403, %v402
        %v418 = vpack.c.b16 %v405, %v404
        %v419 = vpack.c.b16 %v407, %v406
        %v420 = vpack.c.b16 %v409, %v408
        %v421 = vpack.c.b16 %v411, %v410
        %v422 = vpack.c.b16 %v413, %v412
        %v423 = vpack.c.b16 %v415, %v414
        %432 = vmatprep.subr.bf16.mxu0 0
        %433 = vmatpush1.bf16.msra.mxu0 %v423
        %434 = vmatprep.subr.bf16.mxu0 0
        %435 = vmatpush1.bf16.msra.mxu0 %v422
        %436 = vmatprep.subr.bf16.mxu0 0
        %437 = vmatpush1.bf16.msra.mxu0 %v421
        %438 = vmatprep.subr.bf16.mxu0 0
        %439 = vmatpush1.bf16.msra.mxu0 %v420
        %440 = vmatprep.subr.bf16.mxu0 0
        %441 = vmatpush1.bf16.msra.mxu0 %v419
        %442 = vmatprep.subr.bf16.mxu0 0
        %443 = vmatpush1.bf16.msra.mxu0 %v418
        %444 = vmatprep.subr.bf16.mxu0 0
        %445 = vmatpush1.bf16.msra.mxu0 %v417
        %446 = vmatprep.subr.bf16.mxu0 0
        %447 = vmatpush1.bf16.msra.mxu0 %v416
        %448 = vmatprep.subr.bf16.mxu0 0
        %449 = vmatpush2.bf16.msra.mxu0 0
        %450 = vmatprep.subr.bf16.mxu0 0
        %451 = vmatpush2.bf16.msra.mxu0 0
        %452 = vmatprep.subr.bf16.mxu0 0
        %453 = vmatpush2.bf16.msra.mxu0 0
        %454 = vmatprep.subr.bf16.mxu0 0
        %455 = vmatpush2.bf16.msra.mxu0 0
        %456 = vmatprep.subr.bf16.mxu0 0
        %457 = vmatpush2.bf16.msra.mxu0 0
        %458 = vmatprep.subr.bf16.mxu0 0
        %459 = vmatpush2.bf16.msra.mxu0 0
        %460 = vmatprep.subr.bf16.mxu0 0
        %461 = vmatpush2.bf16.msra.mxu0 0
        %462 = vmatprep.subr.bf16.mxu0 0
        %463 = vmatpush2.bf16.msra.mxu0 0
        %464 = vmatprep.mubr.bf16.mxu0 0
        %465 = vmatmul.mubr.bf16.gmra.mxu0 %v367
        %v466 = vpop.f32.mrf.mxu0
        %v467 = vadd.f32 0.0, %v466
        %v468 = vpop.f32.mrf.mxu0
        %v469 = vpop.f32.mrf.mxu0
        %v470 = vpop.f32.mrf.mxu0
        %471 = vdwg.mxu0
        %v472 = vmul.f32 %v467, 0.03125
        %vm473 = vcmask 261120
        %474 = vst.msk [vmem:[%s134] sm:$0xff] %vm473, %v472
        %s475 = sand.u32 %s71, 1
        %s476 = scalar_lea.sflag [#allocation3], %s475
        %s477 = sand.u32 %s71, 1
        %s478 = smul.addr %s477, 8
        %s479 = scalar_lea.vmem [#allocation2], %s478
        // Predicated region
        $region29: #{tpu_custom_call.1} parent=27 // pred_check
          %p480 = pneg %p81
        $region30: #{tpu_custom_call.1} parent=27 // pred_check_branch
          %482 = sbr.rel (%p480) target = $region32
        $region31: #{tpu_custom_call.1} parent=27 // pred_region
          %s484 = ssub.s32 128, 128
          %485 = vsyncadd %s476, %s484
          %s486 = smul.addr %s16, 128
          %s487 = scalar_lea.hbm %s2, %s486
          %s489 = sshll.u32 %s479, 4
          %s490 = int_to_ptr.vmem [resolvable:$true] %s489
          %492 = dma.vmem_to_hbm [thread:$0]  %s490, 128, %s487, %s476
        $region32: #{tpu_custom_call.1} parent=27 // pred_fallthru
          _
      $region28: #{tpu_custom_call.1} parent=5 // pred_fallthru
        _
      %p493 = scmp.le.s32.totalorder 2, %s11
      // Predicated region
      $region33: #{tpu_custom_call.1} parent=5 // pred_check
        %p494 = pneg %p493
      $region34: #{tpu_custom_call.1} parent=5 // pred_check_branch
        %496 = sbr.rel (%p494) target = $region36
      $region35: #{tpu_custom_call.1} parent=5 // pred_region
        %s497 = ssub.s32 %s11, 2
        // Predicated region
        $region37: #{tpu_custom_call.1} parent=35 // pred_check
          %p498 = pneg %p87
        $region38: #{tpu_custom_call.1} parent=35 // pred_check_branch
          %500 = sbr.rel (%p498) target = $region40
        $region39: #{tpu_custom_call.1} parent=35 // pred_region
          %s501 = sand.u32 %s72, 1
          %s502 = scalar_lea.sflag [#allocation3], %s501
          %s503 = sand.u32 %s72, 1
          %s504 = smul.addr %s503, 8
          %s505 = scalar_lea.vmem [#allocation2], %s504
          %506 = dma.done %s502, 128
        $region40: #{tpu_custom_call.1} parent=35 // pred_fallthru
          _
      $region36: #{tpu_custom_call.1} parent=5 // pred_fallthru
        _
    $region6: #{tpu_custom_call.1} parent=1 // loop_footer
      %s15 = sadd.s32 1, %s11
    $region7: #{tpu_custom_call.1} parent=1 // loop_footer_branch
      %10 = sbr.rel target = $region3
    $region8: #{tpu_custom_call.1} parent=1 // loop_exit
      _
    %507 = vsyncpa [#allocation3], 1
    %s508 = scalar_lea.sflag [#allocation3], 1
    %509 = vsyncpa %s508, 1

// kernel: tpu_custom_call.1
$region0: #{tpu_custom_call.1}
  #allocation0 [shape = 'u32[]', space=smem, size = 0x4, offset = 0x4, fixed_abs, tag = 'smem constant byte address 0x4 - core index']
  #allocation1 [shape = 'u32[144,128]{1,0:T(1,128)}', space=vmem, size = 0x12000, scoped, tag = 'internal scratch']
  %s0 = inlined_call_operand.vmem [shape: s32[16,32], index: 0, kind: input, shape index: {}]
  %s1 = inlined_call_operand.vmem [shape: bf16[128,32], index: 1, kind: input, shape index: {}]
  %s2 = inlined_call_operand.hbm [shape: f32[16,32], index: 2, kind: output, shape index: {}]
  %s3 = sld [smem:[#allocation0]]
  $region41: #{tpu_custom_call.1} parent=0
    _
  %s5 = ssub.s32 1, %s3
  %s6 = scalar_select 0, %s5, %s3
  $region1: #{tpu_custom_call.1} parent=0
    #allocation2 [shape = 'u8[8192]{0}', space=vmem, size = 0x2000, scoped, tag = 'output window, operand 0']
    #allocation3 [shape = 's32[2]{0}', space=sflag, size = 0x8, scoped, tag = 'scoped memory for tpu_custom_call.1']
    %7 = vsyncpa [#allocation3], 0
    %s8 = scalar_lea.sflag [#allocation3], 1
    %9 = vsyncpa %s8, 0
    loop: start=0, step=1, limit=4
    $region2: #{tpu_custom_call.1} parent=1 // loop_pre_header
      _
    $region3: #{tpu_custom_call.1} parent=1 // loop_header
      %s11 = sphi 0, %s15
      %p12 = scmp.ge.s32.totalorder %s11, 4
      %s21 = sphi 0, %s23
      %s24 = sphi 0, %s21
      %s25 = sphi 0, %s24
      %s41 = sphi 0, %s25
      %s45 = sphi 0, %s45
      %s47 = sphi 0, %s45
      %s48 = sphi 0, %s47
      %s62 = sphi 0, %s48
      %s68 = sphi 0, %s70
      %s71 = sphi 0, %s68
      %s72 = sphi 0, %s71
      %s88 = sphi 0, %s72
    $region4: #{tpu_custom_call.1} parent=1 // loop_header_branch
      %14 = sbr.rel (%p12) target = $region8
    $region5: #{tpu_custom_call.1} parent=1 // loop_body
      %s16 = ssub.s32 %s11, 1
      %s17 = ssub.s32 %s11, 2
      %s18 = sadd.s32 %s11, 1
      %s19 = ssub.s32 %s11, %s18
      %p20 = scmp.eq.s32.totalorder %s19, 0
      %s22 = sadd.s32 %s21, 1
      %s23 = scalar_select %p20, %s21, %s22
      %p26 = pneg %p20
      %p27 = scmp.eq.s32.totalorder %s11, 1
      %p28 = por %p26, %p27
      %p29 = scmp.ne.s32.totalorder %s21, %s24
      %p30 = scmp.eq.s32.totalorder %s11, 0
      %p31 = por %p29, %p30
      %p32 = scmp.ne.s32.totalorder %s21, %s24
      %p33 = scmp.eq.s32.totalorder %s16, 1
      %p34 = por %p32, %p33
      %p35 = scmp.ne.s32.totalorder %s24, %s25
      %p36 = scmp.eq.s32.totalorder %s16, 0
      %p37 = por %p35, %p36
      %p38 = scmp.ne.s32.totalorder %s24, %s25
      %p39 = scmp.eq.s32.totalorder %s17, 1
      %p40 = por %p38, %p39
      %p42 = scmp.ne.s32.totalorder %s25, %s41
      %p43 = scmp.eq.s32.totalorder %s17, 0
      %p44 = por %p42, %p43
      %s46 = sadd.s32 %s45, 1
      %p49 = scmp.eq.s32.totalorder %s11, 1
      %p50 = scmp.ne.s32.totalorder %s45, %s47
      %p51 = scmp.eq.s32.totalorder %s11, 0
      %p52 = por %p50, %p51
      %p53 = scmp.ne.s32.totalorder %s45, %s47
      %p54 = scmp.eq.s32.totalorder %s16, 1
      %p55 = por %p53, %p54
      %p56 = scmp.ne.s32.totalorder %s47, %s48
      %p57 = scmp.eq.s32.totalorder %s16, 0
      %p58 = por %p56, %p57
      %p59 = scmp.ne.s32.totalorder %s47, %s48
      %p60 = scmp.eq.s32.totalorder %s17, 1
      %p61 = por %p59, %p60
      %p63 = scmp.ne.s32.totalorder %s48, %s62
      %p64 = scmp.eq.s32.totalorder %s17, 0
      %p65 = por %p63, %p64
      %s66 = ssub.s32 %s11, %s18
      %p67 = scmp.eq.s32.totalorder %s66, 0
      %s69 = sadd.s32 %s68, 1
      %s70 = scalar_select %p67, %s68, %s69
      %p73 = pneg %p67
      %p74 = scmp.eq.s32.totalorder %s11, 1
      %p75 = por %p73, %p74
      %p76 = scmp.ne.s32.totalorder %s68, %s71
      %p77 = scmp.eq.s32.totalorder %s11, 0
      %p78 = por %p76, %p77
      %p79 = scmp.ne.s32.totalorder %s68, %s71
      %p80 = scmp.eq.s32.totalorder %s16, 1
      %p81 = por %p79, %p80
      %p82 = scmp.ne.s32.totalorder %s71, %s72
      %p83 = scmp.eq.s32.totalorder %s16, 0
      %p84 = por %p82, %p83
      %p85 = scmp.ne.s32.totalorder %s71, %s72
      %p86 = scmp.eq.s32.totalorder %s17, 1
      %p87 = por %p85, %p86
      %p89 = scmp.ne.s32.totalorder %s72, %s88
      %p90 = scmp.eq.s32.totalorder %s17, 0
      %p91 = por %p89, %p90
      %p92 = scmp.le.s32.totalorder 1, %s11
      %p93 = scmp.lt.s32.totalorder %s11, 3
      %p94 = pnand %p92, %p93
      %p95 = pneg %p94
      // Predicated region
      $region9: #{tpu_custom_call.1} parent=5 // pred_check
        _
      $region10: #{tpu_custom_call.1} parent=5 // pred_check_branch
        %97 = sbr.rel (%p94) target = $region12
      $region11: #{tpu_custom_call.1} parent=5 // pred_region
        %s98 = ssub.s32 %s11, 1
        // Predicated region
        $region13: #{tpu_custom_call.1} parent=11 // pred_check
          %p99 = pneg %p58
        $region14: #{tpu_custom_call.1} parent=11 // pred_check_branch
          %101 = sbr.rel (%p99) target = $region16
        $region15: #{tpu_custom_call.1} parent=11 // pred_region
          _
        $region16: #{tpu_custom_call.1} parent=11 // pred_fallthru
          _
      $region12: #{tpu_custom_call.1} parent=5 // pred_fallthru
        _
      %p102 = scmp.lt.s32.totalorder %s11, 2
      // Predicated region
      $region17: #{tpu_custom_call.1} parent=5 // pred_check
        %p103 = pneg %p102
      $region18: #{tpu_custom_call.1} parent=5 // pred_check_branch
        %105 = sbr.rel (%p103) target = $region20
      $region19: #{tpu_custom_call.1} parent=5 // pred_region
        // Predicated region
        $region21: #{tpu_custom_call.1} parent=19 // pred_check
          %p106 = pneg %p31
        $region22: #{tpu_custom_call.1} parent=19 // pred_check_branch
          %108 = sbr.rel (%p106) target = $region24
        $region23: #{tpu_custom_call.1} parent=19 // pred_region
          %p109 = scmp.lt.s32.totalorder %s11, 1
          %s110 = scalar_select %p109, %s11, 1
          %s111 = smul.addr %s110, 8
          %s112 = scalar_lea.vmem %s0, %s111
        $region24: #{tpu_custom_call.1} parent=19 // pred_fallthru
          _
      $region20: #{tpu_custom_call.1} parent=5 // pred_fallthru
        _
      %p113 = scmp.le.s32.totalorder 1, %s11
      %p114 = scmp.lt.s32.totalorder %s11, 3
      %p115 = pnand %p113, %p114
      %p116 = pneg %p115
      // Predicated region
      $region25: #{tpu_custom_call.1} parent=5 // pred_check
        _
      $region26: #{tpu_custom_call.1} parent=5 // pred_check_branch
        %118 = sbr.rel (%p115) target = $region28
      $region27: #{tpu_custom_call.1} parent=5 // pred_region
        %s119 = ssub.s32 %s11, 1
        %p120 = scmp.lt.s32.totalorder %s16, 1
        %s121 = scalar_select %p120, %s16, 1
        %s122 = smul.addr %s121, 8
        %s123 = scalar_lea.vmem %s0, %s122
        %p124 = pneg %p37
        %p125 = pneg %p34
        %p126 = pneg %p58
        %p127 = pneg %p55
        %p128 = pneg %p84
        %p129 = pneg %p81
        %s130 = sand.u32 %s71, 1
        %s131 = scalar_lea.sflag [#allocation3], %s130
        %s132 = sand.u32 %s71, 1
        %s133 = smul.addr %s132, 8
        %s134 = scalar_lea.vmem [#allocation2], %s133
        %p135 = scmp.lt.s32.totalorder %s16, 1
        %s136 = scalar_select %p135, %s16, 1
        %s137 = smul.addr %s136, 8
        %s138 = scalar_lea.vmem %s0, %s137
        %v140 = vld [vmem:[%s138] sm:$0xff]
        %v141 = vlaneseq
        %v142 = vand.u32 %v141, 127
        %143 = vset.pattern.permute.xlu0 0
        %144 = vperm.xlu0 %143, %v140
        %v145 = vpop.permute.xlu0 %144
        %vm146 = vcmp.eq.s32.totalorder %v145, %v142
        %v147 = vsel %vm146, 1, 0
        %v148 = vcvt.s32.f32 %v147
        %v149 = vadd.f32 %v148, 0.0
        %150 = vset.pattern.permute.xlu0 1
        %151 = vperm.xlu0 %150, %v140
        %v152 = vpop.permute.xlu0 %151
        %vm153 = vcmp.eq.s32.totalorder %v152, %v142
        %v154 = vsel %vm153, 1, 0
        %v155 = vcvt.s32.f32 %v154
        %v156 = vadd.f32 %v149, %v155
        %157 = vset.pattern.permute.xlu0 2
        %158 = vperm.xlu0 %157, %v140
        %v159 = vpop.permute.xlu0 %158
        %vm160 = vcmp.eq.s32.totalorder %v159, %v142
        %v161 = vsel %vm160, 1, 0
        %v162 = vcvt.s32.f32 %v161
        %v163 = vadd.f32 %v156, %v162
        %164 = vset.pattern.permute.xlu0 3
        %165 = vperm.xlu0 %164, %v140
        %v166 = vpop.permute.xlu0 %165
        %vm167 = vcmp.eq.s32.totalorder %v166, %v142
        %v168 = vsel %vm167, 1, 0
        %v169 = vcvt.s32.f32 %v168
        %v170 = vadd.f32 %v163, %v169
        %171 = vset.pattern.permute.xlu0 4
        %172 = vperm.xlu0 %171, %v140
        %v173 = vpop.permute.xlu0 %172
        %vm174 = vcmp.eq.s32.totalorder %v173, %v142
        %v175 = vsel %vm174, 1, 0
        %v176 = vcvt.s32.f32 %v175
        %v177 = vadd.f32 %v170, %v176
        %178 = vset.pattern.permute.xlu0 5
        %179 = vperm.xlu0 %178, %v140
        %v180 = vpop.permute.xlu0 %179
        %vm181 = vcmp.eq.s32.totalorder %v180, %v142
        %v182 = vsel %vm181, 1, 0
        %v183 = vcvt.s32.f32 %v182
        %v184 = vadd.f32 %v177, %v183
        %185 = vset.pattern.permute.xlu0 6
        %186 = vperm.xlu0 %185, %v140
        %v187 = vpop.permute.xlu0 %186
        %vm188 = vcmp.eq.s32.totalorder %v187, %v142
        %v189 = vsel %vm188, 1, 0
        %v190 = vcvt.s32.f32 %v189
        %v191 = vadd.f32 %v184, %v190
        %192 = vset.pattern.permute.xlu0 7
        %193 = vperm.xlu0 %192, %v140
        %v194 = vpop.permute.xlu0 %193
        %vm195 = vcmp.eq.s32.totalorder %v194, %v142
        %v196 = vsel %vm195, 1, 0
        %v197 = vcvt.s32.f32 %v196
        %v198 = vadd.f32 %v191, %v197
        %199 = vset.pattern.permute.xlu0 8
        %200 = vperm.xlu0 %199, %v140
        %v201 = vpop.permute.xlu0 %200
        %vm202 = vcmp.eq.s32.totalorder %v201, %v142
        %v203 = vsel %vm202, 1, 0
        %v204 = vcvt.s32.f32 %v203
        %v205 = vadd.f32 %v198, %v204
        %206 = vset.pattern.permute.xlu0 9
        %207 = vperm.xlu0 %206, %v140
        %v208 = vpop.permute.xlu0 %207
        %vm209 = vcmp.eq.s32.totalorder %v208, %v142
        %v210 = vsel %vm209, 1, 0
        %v211 = vcvt.s32.f32 %v210
        %v212 = vadd.f32 %v205, %v211
        %213 = vset.pattern.permute.xlu0 10
        %214 = vperm.xlu0 %213, %v140
        %v215 = vpop.permute.xlu0 %214
        %vm216 = vcmp.eq.s32.totalorder %v215, %v142
        %v217 = vsel %vm216, 1, 0
        %v218 = vcvt.s32.f32 %v217
        %v219 = vadd.f32 %v212, %v218
        %220 = vset.pattern.permute.xlu0 11
        %221 = vperm.xlu0 %220, %v140
        %v222 = vpop.permute.xlu0 %221
        %vm223 = vcmp.eq.s32.totalorder %v222, %v142
        %v224 = vsel %vm223, 1, 0
        %v225 = vcvt.s32.f32 %v224
        %v226 = vadd.f32 %v219, %v225
        %227 = vset.pattern.permute.xlu0 12
        %228 = vperm.xlu0 %227, %v140
        %v229 = vpop.permute.xlu0 %228
        %vm230 = vcmp.eq.s32.totalorder %v229, %v142
        %v231 = vsel %vm230, 1, 0
        %v232 = vcvt.s32.f32 %v231
        %v233 = vadd.f32 %v226, %v232
        %234 = vset.pattern.permute.xlu0 13
        %235 = vperm.xlu0 %234, %v140
        %v236 = vpop.permute.xlu0 %235
        %vm237 = vcmp.eq.s32.totalorder %v236, %v142
        %v238 = vsel %vm237, 1, 0
        %v239 = vcvt.s32.f32 %v238
        %v240 = vadd.f32 %v233, %v239
        %241 = vset.pattern.permute.xlu0 14
        %242 = vperm.xlu0 %241, %v140
        %v243 = vpop.permute.xlu0 %242
        %vm244 = vcmp.eq.s32.totalorder %v243, %v142
        %v245 = vsel %vm244, 1, 0
        %v246 = vcvt.s32.f32 %v245
        %v247 = vadd.f32 %v240, %v246
        %248 = vset.pattern.permute.xlu0 15
        %249 = vperm.xlu0 %248, %v140
        %v250 = vpop.permute.xlu0 %249
        %vm251 = vcmp.eq.s32.totalorder %v250, %v142
        %v252 = vsel %vm251, 1, 0
        %v253 = vcvt.s32.f32 %v252
        %v254 = vadd.f32 %v247, %v253
        %255 = vset.pattern.permute.xlu0 16
        %256 = vperm.xlu0 %255, %v140
        %v257 = vpop.permute.xlu0 %256
        %vm258 = vcmp.eq.s32.totalorder %v257, %v142
        %v259 = vsel %vm258, 1, 0
        %v260 = vcvt.s32.f32 %v259
        %v261 = vadd.f32 %v254, %v260
        %262 = vset.pattern.permute.xlu0 17
        %263 = vperm.xlu0 %262, %v140
        %v264 = vpop.permute.xlu0 %263
        %vm265 = vcmp.eq.s32.totalorder %v264, %v142
        %v266 = vsel %vm265, 1, 0
        %v267 = vcvt.s32.f32 %v266
        %v268 = vadd.f32 %v261, %v267
        %269 = vset.pattern.permute.xlu0 18
        %270 = vperm.xlu0 %269, %v140
        %v271 = vpop.permute.xlu0 %270
        %vm272 = vcmp.eq.s32.totalorder %v271, %v142
        %v273 = vsel %vm272, 1, 0
        %v274 = vcvt.s32.f32 %v273
        %v275 = vadd.f32 %v268, %v274
        %276 = vset.pattern.permute.xlu0 19
        %277 = vperm.xlu0 %276, %v140
        %v278 = vpop.permute.xlu0 %277
        %vm279 = vcmp.eq.s32.totalorder %v278, %v142
        %v280 = vsel %vm279, 1, 0
        %v281 = vcvt.s32.f32 %v280
        %v282 = vadd.f32 %v275, %v281
        %283 = vset.pattern.permute.xlu0 20
        %284 = vperm.xlu0 %283, %v140
        %v285 = vpop.permute.xlu0 %284
        %vm286 = vcmp.eq.s32.totalorder %v285, %v142
        %v287 = vsel %vm286, 1, 0
        %v288 = vcvt.s32.f32 %v287
        %v289 = vadd.f32 %v282, %v288
        %290 = vset.pattern.permute.xlu0 21
        %291 = vperm.xlu0 %290, %v140
        %v292 = vpop.permute.xlu0 %291
        %vm293 = vcmp.eq.s32.totalorder %v292, %v142
        %v294 = vsel %vm293, 1, 0
        %v295 = vcvt.s32.f32 %v294
        %v296 = vadd.f32 %v289, %v295
        %297 = vset.pattern.permute.xlu0 22
        %298 = vperm.xlu0 %297, %v140
        %v299 = vpop.permute.xlu0 %298
        %vm300 = vcmp.eq.s32.totalorder %v299, %v142
        %v301 = vsel %vm300, 1, 0
        %v302 = vcvt.s32.f32 %v301
        %v303 = vadd.f32 %v296, %v302
        %304 = vset.pattern.permute.xlu0 23
        %305 = vperm.xlu0 %304, %v140
        %v306 = vpop.permute.xlu0 %305
        %vm307 = vcmp.eq.s32.totalorder %v306, %v142
        %v308 = vsel %vm307, 1, 0
        %v309 = vcvt.s32.f32 %v308
        %v310 = vadd.f32 %v303, %v309
        %311 = vset.pattern.permute.xlu0 24
        %312 = vperm.xlu0 %311, %v140
        %v313 = vpop.permute.xlu0 %312
        %vm314 = vcmp.eq.s32.totalorder %v313, %v142
        %v315 = vsel %vm314, 1, 0
        %v316 = vcvt.s32.f32 %v315
        %v317 = vadd.f32 %v310, %v316
        %318 = vset.pattern.permute.xlu0 25
        %319 = vperm.xlu0 %318, %v140
        %v320 = vpop.permute.xlu0 %319
        %vm321 = vcmp.eq.s32.totalorder %v320, %v142
        %v322 = vsel %vm321, 1, 0
        %v323 = vcvt.s32.f32 %v322
        %v324 = vadd.f32 %v317, %v323
        %325 = vset.pattern.permute.xlu0 26
        %326 = vperm.xlu0 %325, %v140
        %v327 = vpop.permute.xlu0 %326
        %vm328 = vcmp.eq.s32.totalorder %v327, %v142
        %v329 = vsel %vm328, 1, 0
        %v330 = vcvt.s32.f32 %v329
        %v331 = vadd.f32 %v324, %v330
        %332 = vset.pattern.permute.xlu0 27
        %333 = vperm.xlu0 %332, %v140
        %v334 = vpop.permute.xlu0 %333
        %vm335 = vcmp.eq.s32.totalorder %v334, %v142
        %v336 = vsel %vm335, 1, 0
        %v337 = vcvt.s32.f32 %v336
        %v338 = vadd.f32 %v331, %v337
        %339 = vset.pattern.permute.xlu0 28
        %340 = vperm.xlu0 %339, %v140
        %v341 = vpop.permute.xlu0 %340
        %vm342 = vcmp.eq.s32.totalorder %v341, %v142
        %v343 = vsel %vm342, 1, 0
        %v344 = vcvt.s32.f32 %v343
        %v345 = vadd.f32 %v338, %v344
        %346 = vset.pattern.permute.xlu0 29
        %347 = vperm.xlu0 %346, %v140
        %v348 = vpop.permute.xlu0 %347
        %vm349 = vcmp.eq.s32.totalorder %v348, %v142
        %v350 = vsel %vm349, 1, 0
        %v351 = vcvt.s32.f32 %v350
        %v352 = vadd.f32 %v345, %v351
        %353 = vset.pattern.permute.xlu0 30
        %354 = vperm.xlu0 %353, %v140
        %v355 = vpop.permute.xlu0 %354
        %vm356 = vcmp.eq.s32.totalorder %v355, %v142
        %v357 = vsel %vm356, 1, 0
        %v358 = vcvt.s32.f32 %v357
        %v359 = vadd.f32 %v352, %v358
        %360 = vset.pattern.permute.xlu0 31
        %361 = vperm.xlu0 %360, %v140
        %v362 = vpop.permute.xlu0 %361
        %vm363 = vcmp.eq.s32.totalorder %v362, %v142
        %v364 = vsel %vm363, 1, 0
        %v365 = vcvt.s32.f32 %v364
        %v366 = vadd.f32 %v359, %v365
        %v367 = vpack.c.bf16 %v366, %v366
        %v368 = vld [vmem:[%s1] sm:$0xf]
        %v369 = vld [vmem:[%s1 + $0x4] sm:$0xf]
        %v370 = vld [vmem:[%s1 + $0x8] sm:$0xf]
        %v371 = vld [vmem:[%s1 + $0xc] sm:$0xf]
        %v372 = vld [vmem:[%s1 + $0x10] sm:$0xf]
        %v373 = vld [vmem:[%s1 + $0x14] sm:$0xf]
        %v374 = vld [vmem:[%s1 + $0x18] sm:$0xf]
        %v375 = vld [vmem:[%s1 + $0x1c] sm:$0xf]
        %v376 = vld [vmem:[%s1 + $0x20] sm:$0xf]
        %v377 = vld [vmem:[%s1 + $0x24] sm:$0xf]
        %v378 = vld [vmem:[%s1 + $0x28] sm:$0xf]
        %v379 = vld [vmem:[%s1 + $0x2c] sm:$0xf]
        %v380 = vld [vmem:[%s1 + $0x30] sm:$0xf]
        %v381 = vld [vmem:[%s1 + $0x34] sm:$0xf]
        %v382 = vld [vmem:[%s1 + $0x38] sm:$0xf]
        %v383 = vld [vmem:[%s1 + $0x3c] sm:$0xf]
        %v400 = vunpack.c.l.b16 %v368
        %v401 = vunpack.c.l.b16 %v369
        %v402 = vunpack.c.l.b16 %v370
        %v403 = vunpack.c.l.b16 %v371
        %v404 = vunpack.c.l.b16 %v372
        %v405 = vunpack.c.l.b16 %v373
        %v406 = vunpack.c.l.b16 %v374
        %v407 = vunpack.c.l.b16 %v375
        %v408 = vunpack.c.l.b16 %v376
        %v409 = vunpack.c.l.b16 %v377
        %v410 = vunpack.c.l.b16 %v378
        %v411 = vunpack.c.l.b16 %v379
        %v412 = vunpack.c.l.b16 %v380
        %v413 = vunpack.c.l.b16 %v381
        %v414 = vunpack.c.l.b16 %v382
        %v415 = vunpack.c.l.b16 %v383
        %v416 = vpack.c.b16 %v401, %v400
        %v417 = vpack.c.b16 %v403, %v402
        %v418 = vpack.c.b16 %v405, %v404
        %v419 = vpack.c.b16 %v407, %v406
        %v420 = vpack.c.b16 %v409, %v408
        %v421 = vpack.c.b16 %v411, %v410
        %v422 = vpack.c.b16 %v413, %v412
        %v423 = vpack.c.b16 %v415, %v414
        %432 = vmatprep.subr.bf16.mxu0 0
        %433 = vmatpush1.bf16.msra.mxu0 %v423
        %434 = vmatprep.subr.bf16.mxu0 0
        %435 = vmatpush1.bf16.msra.mxu0 %v422
        %436 = vmatprep.subr.bf16.mxu0 0
        %437 = vmatpush1.bf16.msra.mxu0 %v421
        %438 = vmatprep.subr.bf16.mxu0 0
        %439 = vmatpush1.bf16.msra.mxu0 %v420
        %440 = vmatprep.subr.bf16.mxu0 0
        %441 = vmatpush1.bf16.msra.mxu0 %v419
        %442 = vmatprep.subr.bf16.mxu0 0
        %443 = vmatpush1.bf16.msra.mxu0 %v418
        %444 = vmatprep.subr.bf16.mxu0 0
        %445 = vmatpush1.bf16.msra.mxu0 %v417
        %446 = vmatprep.subr.bf16.mxu0 0
        %447 = vmatpush1.bf16.msra.mxu0 %v416
        %448 = vmatprep.subr.bf16.mxu0 0
        %449 = vmatpush2.bf16.msra.mxu0 0
        %450 = vmatprep.subr.bf16.mxu0 0
        %451 = vmatpush2.bf16.msra.mxu0 0
        %452 = vmatprep.subr.bf16.mxu0 0
        %453 = vmatpush2.bf16.msra.mxu0 0
        %454 = vmatprep.subr.bf16.mxu0 0
        %455 = vmatpush2.bf16.msra.mxu0 0
        %456 = vmatprep.subr.bf16.mxu0 0
        %457 = vmatpush2.bf16.msra.mxu0 0
        %458 = vmatprep.subr.bf16.mxu0 0
        %459 = vmatpush2.bf16.msra.mxu0 0
        %460 = vmatprep.subr.bf16.mxu0 0
        %461 = vmatpush2.bf16.msra.mxu0 0
        %462 = vmatprep.subr.bf16.mxu0 0
        %463 = vmatpush2.bf16.msra.mxu0 0
        %464 = vmatprep.mubr.bf16.mxu0 0
        %465 = vmatmul.mubr.bf16.gmra.mxu0 %v367
        %v466 = vpop.f32.mrf.mxu0
        %v467 = vadd.f32 0.0, %v466
        %v468 = vpop.f32.mrf.mxu0
        %v469 = vpop.f32.mrf.mxu0
        %v470 = vpop.f32.mrf.mxu0
        %471 = vdwg.mxu0
        %v472 = vmul.f32 %v467, 0.03125
        %vm473 = vcmask 261120
        %474 = vst.msk [vmem:[%s134] sm:$0xff] %vm473, %v472
        %s475 = sand.u32 %s71, 1
        %s476 = scalar_lea.sflag [#allocation3], %s475
        %s477 = sand.u32 %s71, 1
        %s478 = smul.addr %s477, 8
        %s479 = scalar_lea.vmem [#allocation2], %s478
        // Predicated region
        $region29: #{tpu_custom_call.1} parent=27 // pred_check
          %p480 = pneg %p81
        $region30: #{tpu_custom_call.1} parent=27 // pred_check_branch
          %482 = sbr.rel (%p480) target = $region32
        $region31: #{tpu_custom_call.1} parent=27 // pred_region
          %s484 = ssub.s32 128, 128
          %485 = vsyncadd %s476, %s484
          %s486 = smul.addr %s16, 128
          %s487 = scalar_lea.hbm %s2, %s486
          %s489 = sshll.u32 %s479, 4
          %s490 = int_to_ptr.vmem [resolvable:$true] %s489
          %492 = dma.vmem_to_hbm [thread:$0]  %s490, 128, %s487, %s476
        $region32: #{tpu_custom_call.1} parent=27 // pred_fallthru
          _
      $region28: #{tpu_custom_call.1} parent=5 // pred_fallthru
        _
      %p493 = scmp.le.s32.totalorder 2, %s11
      // Predicated region
      $region33: #{tpu_custom_call.1} parent=5 // pred_check
        %p494 = pneg %p493
      $region34: #{tpu_custom_call.1} parent=5 // pred_check_branch
        %496 = sbr.rel (%p494) target = $region36
      $region35: #{tpu_custom_call.1} parent=5 // pred_region
        %s497 = ssub.s32 %s11, 2
        // Predicated region
        $region37: #{tpu_custom_call.1} parent=35 // pred_check
          %p498 = pneg %p87
        $region38: #{tpu_custom_call.1} parent=35 // pred_check_branch
          %500 = sbr.rel (%p498) target = $region40
        $region39: #{tpu_custom_call.1} parent=35 // pred_region
          %s501 = sand.u32 %s72, 1
          %s502 = scalar_lea.sflag [#allocation3], %s501
          %s503 = sand.u32 %s72, 1
          %s504 = smul.addr %s503, 8
          %s505 = scalar_lea.vmem [#allocation2], %s504
          %506 = dma.done %s502, 128
        $region40: #{tpu_custom_call.1} parent=35 // pred_fallthru
          _
      $region36: #{tpu_custom_call.1} parent=5 // pred_fallthru
        _
    $region6: #{tpu_custom_call.1} parent=1 // loop_footer
      %s15 = sadd.s32 1, %s11
    $region7: #{tpu_custom_call.1} parent=1 // loop_footer_branch
      %10 = sbr.rel target = $region3
    $region8: #{tpu_custom_call.1} parent=1 // loop_exit
      _
    %507 = vsyncpa [#allocation3], 1
    %s508 = scalar_lea.sflag [#allocation3], 1
    %509 = vsyncpa %s508, 1

</llo_original>
